<compile_context>
chip_gen: v6e
topology: v6e:2x2x1
jax: 0.10.0
libtpu: 0.0.40
codegen_flags: <defaults>
</compile_context>

<pallas_src>
import jax
import jax.numpy as jnp
from jax import lax
from jax.experimental import pallas as pl
from jax.experimental.pallas import tpu as pltpu

PATCH = 4                     # patch size
EMBED = 128                   # embedding dim (multiple of 128 -> lane-dense)
MLP_DIM = 512                 # MLP hidden dim
NUM_PREFIX = 1                # number of prefix (CLS) tokens stripped in forward()
PPC = 3 * PATCH * PATCH       # 48 values per patch
PPC_PAD = 128                 # lane-dense padded patch vector length
EPS = 1e-6                    # timm ViT LayerNorm eps (torch default would be 1e-5)

# rows of the packed (PTAB_ROWS, EMBED) f32 parameter table
(ROW_LN1_G, ROW_LN1_B, ROW_BQ, ROW_BK, ROW_BV, ROW_BPROJ,
 ROW_LN2_G, ROW_LN2_B, ROW_B2, ROW_LNF_G, ROW_LNF_B) = range(11)
PTAB_ROWS = 16                # padded to a sublane multiple


# ------------------------------------------------------------------ helpers

def _layernorm(x, g, b):
    mu = jnp.mean(x, axis=-1, keepdims=True)
    var = jnp.mean((x - mu) ** 2, axis=-1, keepdims=True)
    return (x - mu) * lax.rsqrt(var + EPS) * g + b


def _erf(x):
    # Abramowitz & Stegun 7.1.26 polynomial (|err| < 1.5e-7): matches
    # PyTorch's exact-erf nn.GELU far below bf16 matmul noise.  The divide is
    # an approx EUP reciprocal (free slot); error << the bf16 cast that follows.
    a1, a2, a3, a4, a5 = 0.254829592, -0.284496736, 1.421413741, -1.453152027, 1.061405429
    p = 0.3275911
    s = jnp.where(x >= 0.0, 1.0, -1.0)
    z = jnp.abs(x)
    t = pl.reciprocal(1.0 + p * z, approx=True)
    poly = ((((a5 * t + a4) * t + a3) * t + a2) * t + a1) * t
    return s * (1.0 - poly * jnp.exp(-z * z))


def _gelu_exact(x):
    return 0.5 * x * (1.0 + _erf(x * 0.7071067811865476))


# ------------------------------------------------------------------ kernel

def _make_kernel(n_batch, n_patches):
    """Kernel processing `n_batch` stacked batch elements per grid step."""
    D = EMBED
    N = n_patches
    NT = n_batch * N                       # output tokens per step (CLS stripped)
    T = n_batch * (N + NUM_PREFIX)         # total tokens per step (CLS rows last)
    scale = 1.0 / (float(D) ** 0.5)

    def kernel(patches_ref, tok_ref, w_patch, wqkv, wproj, w1, b1, w2, ptab,
               out_ref):
        pt = ptab[...]                                             # (16, D) f32

        # ---- patch embedding + CLS/pos/bias additive table (fused) ----
        x = jnp.dot(patches_ref[...], w_patch[...],
                    preferred_element_type=jnp.float32) + tok_ref[...]   # (T, D)

        # ---- pre-LN single-head self-attention (fused qkv weight) ----
        h = _layernorm(x, pt[ROW_LN1_G], pt[ROW_LN1_B]).astype(jnp.bfloat16)
        qkv = jnp.dot(h, wqkv[...], preferred_element_type=jnp.float32)  # (T, 3D)
        q = qkv[:, :D] + pt[ROW_BQ]          # lane-tile-aligned slices: free
        k = qkv[:, D:2 * D] + pt[ROW_BK]
        v = qkv[:, 2 * D:] + pt[ROW_BV]
        s = lax.dot_general(q.astype(jnp.bfloat16), k.astype(jnp.bfloat16),
                            (((1,), (1,)), ((), ())),
                            preferred_element_type=jnp.float32) * scale
        if n_batch > 1:
            # block-diagonal mask: tokens only attend within their own batch.
            r = lax.broadcasted_iota(jnp.int32, (T, T), 0)
            c = lax.broadcasted_iota(jnp.int32, (T, T), 1)

            def bid(i):                       # batch id per token row (no int div)
                pb = jnp.zeros_like(i)
                for b in range(1, n_batch):
                    pb = pb + (i >= b * N).astype(jnp.int32)
                return jnp.where(i < NT, pb, i - NT)

            s = jnp.where(bid(r) == bid(c), s, -1e30)
        s = s - jnp.max(s, axis=-1, keepdims=True)
        p = jnp.exp(s)
        p = p * pl.reciprocal(jnp.sum(p, axis=-1, keepdims=True), approx=True)
        attn = jnp.dot(p.astype(jnp.bfloat16), v.astype(jnp.bfloat16),
                       preferred_element_type=jnp.float32)
        x = x + jnp.dot(attn.astype(jnp.bfloat16), wproj[...],
                        preferred_element_type=jnp.float32) + pt[ROW_BPROJ]

        # ---- MLP (exact-erf GELU) ----
        h = _layernorm(x, pt[ROW_LN2_G], pt[ROW_LN2_B]).astype(jnp.bfloat16)
        h = jnp.dot(h, w1[...], preferred_element_type=jnp.float32) + b1[...]
        h = _gelu_exact(h).astype(jnp.bfloat16)
        x = x + jnp.dot(h, w2[...], preferred_element_type=jnp.float32) + pt[ROW_B2]

        # ---- final LayerNorm; CLS slots are the LAST rows -> tile-aligned strip
        y = _layernorm(x, pt[ROW_LNF_G], pt[ROW_LNF_B])
        out_ref[...] = y[:NT, :]

    return kernel, T, NT


# ------------------------------------------------------------------ params

def init_params(key, n_patches):
    ks = jax.random.split(key, 7)
    D, M = EMBED, MLP_DIM
    s = 0.02

    w_patch = jnp.zeros((PPC_PAD, D), jnp.float32)
    w_patch = w_patch.at[:PPC].set(jax.random.normal(ks[0], (PPC, D), jnp.float32) * s)
    cls = jax.random.normal(ks[1], (1, D), jnp.float32) * s
    pos = jax.random.normal(ks[2], (n_patches + NUM_PREFIX, D), jnp.float32) * s
    b_patch = jnp.zeros((1, D), jnp.float32)
    # CLS token + its positional embedding fold into one additive row; the patch
    # rows fold pos-embed + patch-embed bias (CLS row excludes the patch bias).
    tok_cls = cls + pos[:NUM_PREFIX]                       # (1, D)
    tok_patch = pos[NUM_PREFIX:] + b_patch                 # (N, D)

    def w(k, shape):  # bf16 matmul weights (f32 accumulation in-kernel)
        return (jax.random.normal(k, shape, jnp.float32) * s).astype(jnp.bfloat16)

    # packed small-parameter table: LN gammas = 1, betas / biases = 0
    ptab = jnp.zeros((PTAB_ROWS, D), jnp.float32)
    ptab = ptab.at[ROW_LN1_G].set(1.0).at[ROW_LN2_G].set(1.0).at[ROW_LNF_G].set(1.0)

    return dict(
        w_patch=w_patch.astype(jnp.bfloat16),
        tok_patch=tok_patch, tok_cls=tok_cls,
        wqkv=w(ks[3], (D, 3 * D)),            # fused q/k/v weight
        wproj=w(ks[4], (D, D)),
        w1=w(ks[5], (D, M)), b1=jnp.zeros((1, M), jnp.float32),
        w2=w(ks[6], (M, D)),
        ptab=ptab,
    )


# ------------------------------------------------------------------ wrapper

def _tc_per_chip():
    """2 TensorCores per chip on v7x, else 1 (v5e/v6e)."""
    try:
        kind = jax.devices()[0].device_kind.lower()
    except Exception:
        return 1
    return 2 if ("v7" in kind or "7x" in kind) else 1


@jax.jit
def hist_encoder_forward(x, params):
    """x: (B, 3, H, W) float32 NCHW (already preprocessed).
    Returns (B, N_patches, EMBED) — features with prefix tokens stripped."""
    B, C, H, W = x.shape
    nH, nW = H // PATCH, W // PATCH
    N = nH * nW

    # v7x: one batch element per TensorCore (grid parallel).  v5e/v6e (single
    # TC): collapse the batch into one grid step (block-diagonal attention).
    num_tc = _tc_per_chip()
    G = num_tc if (num_tc > 1 and B % num_tc == 0) else 1
    Bblk = B // G

    kernel, T, NT = _make_kernel(Bblk, N)

    # Host-side unfold (== Conv2d stride=patch).  Chunks of Bblk batches are
    # stacked row-wise; CLS slots are appended as zero rows at the END of each
    # chunk; the patch vector is zero-padded 48 -> 128 lanes; DMA'd as bf16.
    patches = x.reshape(B, C, nH, PATCH, nW, PATCH)
    patches = patches.transpose(0, 2, 4, 1, 3, 5).reshape(G, Bblk * N, PPC)
    patches = jnp.pad(patches, ((0, 0), (0, Bblk * NUM_PREFIX), (0, PPC_PAD - PPC)))
    patches = patches.astype(jnp.bfloat16)

    # additive token table matching the per-chunk row layout
    tok = jnp.concatenate([jnp.tile(params["tok_patch"], (Bblk, 1)),
                           jnp.tile(params["tok_cls"], (Bblk, 1))], axis=0)   # (T, D)

    out = pl.pallas_call(
        kernel,
        out_shape=jax.ShapeDtypeStruct((G, NT, EMBED), jnp.float32),
        grid_spec=pltpu.PrefetchScalarGridSpec(
            num_scalar_prefetch=0,
            grid=(G,),
            in_specs=[
                pl.BlockSpec((None, T, PPC_PAD), lambda g: (g, 0, 0)),
                pl.BlockSpec((T, EMBED), lambda g: (0, 0)),
                pl.BlockSpec(params["w_patch"].shape, lambda g: (0, 0)),
                pl.BlockSpec(params["wqkv"].shape, lambda g: (0, 0)),
                pl.BlockSpec(params["wproj"].shape, lambda g: (0, 0)),
                pl.BlockSpec(params["w1"].shape, lambda g: (0, 0)),
                pl.BlockSpec(params["b1"].shape, lambda g: (0, 0)),
                pl.BlockSpec(params["w2"].shape, lambda g: (0, 0)),
                pl.BlockSpec(params["ptab"].shape, lambda g: (0, 0)),
            ],
            out_specs=pl.BlockSpec((None, NT, EMBED), lambda g: (g, 0, 0)),
        ),
        # Working set (< ~0.5 MB incl. bf16 weights) fits every generation's
        # VMEM (even v7x's 64 MiB) with huge headroom -> no limit tuning.
        compiler_params=pltpu.CompilerParams(dimension_semantics=("parallel",)),
    )(patches, tok, params["w_patch"], params["wqkv"], params["wproj"],
      params["w1"], params["b1"], params["w2"], params["ptab"])

    # (G, Bblk*N, D) -> (B, N, D): contiguous reshape, batch order preserved.
    return out.reshape(B, N, EMBED)


# ------------------------------------------------------------------ main

if __name__ == "__main__":
    key = jax.random.PRNGKey(0)
    kx, kp = jax.random.split(key)
    # small NCHW input consistent with a 3-channel image encoder: batch=2, 16x16
    x = jax.random.uniform(kx, (2, 3, 16, 16), jnp.float32)   # already preprocessed
    params = init_params(kp, n_patches=(16 // PATCH) * (16 // PATCH))

    out = hist_encoder_forward(x, params)
    out = jax.block_until_ready(out)
    assert out.shape == (2, 16, EMBED), out.shape
    assert out.dtype == jnp.float32
    print("KERNEL_OK")
</pallas_src>

<mosaic_0001>
module attributes {stable_mosaic.version = 11 : i64} {
  func.func @kernel(%arg0: i32, %arg1: memref<1x34x128xbf16, #tpu.memory_space<vmem>>, %arg2: memref<34x128xf32, #tpu.memory_space<vmem>>, %arg3: memref<128x128xbf16, #tpu.memory_space<vmem>>, %arg4: memref<128x384xbf16, #tpu.memory_space<vmem>>, %arg5: memref<128x128xbf16, #tpu.memory_space<vmem>>, %arg6: memref<128x512xbf16, #tpu.memory_space<vmem>>, %arg7: memref<1x512xf32, #tpu.memory_space<vmem>>, %arg8: memref<512x128xbf16, #tpu.memory_space<vmem>>, %arg9: memref<16x128xf32, #tpu.memory_space<vmem>>, %arg10: memref<1x32x128xf32, #tpu.memory_space<vmem>>) attributes {dimension_semantics = [#tpu.dimension_semantics<parallel>], iteration_bounds = array<i64: 1>, scalar_prefetch = 0 : i64, scratch_operands = 0 : i64, tpu.core_type = #tpu.core_type<tc>, window_params = [{transform_indices = @transform_0, window_bounds = array<i64: 1, 34, 128>}, {pipeline_mode = #tpu.pipeline_mode<synchronous>, transform_indices = @transform_1, window_bounds = array<i64: 34, 128>}, {pipeline_mode = #tpu.pipeline_mode<synchronous>, transform_indices = @transform_2, window_bounds = array<i64: 128, 128>}, {pipeline_mode = #tpu.pipeline_mode<synchronous>, transform_indices = @transform_3, window_bounds = array<i64: 128, 384>}, {pipeline_mode = #tpu.pipeline_mode<synchronous>, transform_indices = @transform_4, window_bounds = array<i64: 128, 128>}, {pipeline_mode = #tpu.pipeline_mode<synchronous>, transform_indices = @transform_5, window_bounds = array<i64: 128, 512>}, {pipeline_mode = #tpu.pipeline_mode<synchronous>, transform_indices = @transform_6, window_bounds = array<i64: 1, 512>}, {pipeline_mode = #tpu.pipeline_mode<synchronous>, transform_indices = @transform_7, window_bounds = array<i64: 512, 128>}, {pipeline_mode = #tpu.pipeline_mode<synchronous>, transform_indices = @transform_8, window_bounds = array<i64: 16, 128>}, {transform_indices = @transform_9, window_bounds = array<i64: 1, 32, 128>}]} {
    %c0 = arith.constant 0 : index
    %c0_0 = arith.constant 0 : index
    %0 = vector.load %arg9[%c0, %c0_0] : memref<16x128xf32, #tpu.memory_space<vmem>>, vector<16x128xf32>
    %c0_1 = arith.constant 0 : index
    %c0_2 = arith.constant 0 : index
    %c0_3 = arith.constant 0 : index
    %1 = vector.load %arg1[%c0_1, %c0_2, %c0_3] : memref<1x34x128xbf16, #tpu.memory_space<vmem>>, vector<1x34x128xbf16>
    %2 = vector.shape_cast %1 : vector<1x34x128xbf16> to vector<34x128xbf16>
    %c0_4 = arith.constant 0 : index
    %c0_5 = arith.constant 0 : index
    %3 = vector.load %arg3[%c0_4, %c0_5] : memref<128x128xbf16, #tpu.memory_space<vmem>>, vector<128x128xbf16>
    %cst = arith.constant dense<0.000000e+00> : vector<34x128xf32>
    %4 = tpu.matmul %2, %3, %cst {dimension_numbers = #tpu.dot_dimension_numbers<[1], [0], [0], [1], [0, 0, 1, 1], [], []>} : vector<34x128xbf16>, vector<128x128xbf16>, vector<34x128xf32> -> vector<34x128xf32>
    %c0_6 = arith.constant 0 : index
    %c0_7 = arith.constant 0 : index
    %5 = vector.load %arg2[%c0_6, %c0_7] : memref<34x128xf32, #tpu.memory_space<vmem>>, vector<34x128xf32>
    %6 = arith.addf %4, %5 : vector<34x128xf32>
    %7 = vector.extract_strided_slice %0 {offsets = [0, 0], sizes = [1, 128], strides = [1, 1]} : vector<16x128xf32> to vector<1x128xf32>
    %8 = vector.shape_cast %7 : vector<1x128xf32> to vector<128xf32>
    %9 = vector.extract_strided_slice %0 {offsets = [1, 0], sizes = [1, 128], strides = [1, 1]} : vector<16x128xf32> to vector<1x128xf32>
    %10 = vector.shape_cast %9 : vector<1x128xf32> to vector<128xf32>
    %cst_8 = arith.constant dense<0.000000e+00> : vector<34xf32>
    %11 = vector.multi_reduction <add>, %6, %cst_8 [1] : vector<34x128xf32> to vector<34xf32>
    %12 = vector.shape_cast %11 : vector<34xf32> to vector<34x1xf32>
    %cst_9 = arith.constant 1.280000e+02 : f32
    %13 = vector.broadcast %cst_9 : f32 to vector<34x1xf32>
    %14 = arith.divf %12, %13 : vector<34x1xf32>
    %15 = vector.broadcast %14 : vector<34x1xf32> to vector<34x128xf32>
    %16 = arith.subf %6, %15 : vector<34x128xf32>
    %17 = arith.mulf %16, %16 : vector<34x128xf32>
    %cst_10 = arith.constant dense<0.000000e+00> : vector<34xf32>
    %18 = vector.multi_reduction <add>, %17, %cst_10 [1] : vector<34x128xf32> to vector<34xf32>
    %19 = vector.shape_cast %18 : vector<34xf32> to vector<34x1xf32>
    %cst_11 = arith.constant 1.280000e+02 : f32
    %20 = vector.broadcast %cst_11 : f32 to vector<34x1xf32>
    %21 = arith.divf %19, %20 : vector<34x1xf32>
    %22 = vector.broadcast %14 : vector<34x1xf32> to vector<34x128xf32>
    %23 = arith.subf %6, %22 : vector<34x128xf32>
    %cst_12 = arith.constant 9.99999997E-7 : f32
    %24 = vector.broadcast %cst_12 : f32 to vector<34x1xf32>
    %25 = arith.addf %21, %24 : vector<34x1xf32>
    %26 = math.rsqrt %25 : vector<34x1xf32>
    %27 = vector.broadcast %26 : vector<34x1xf32> to vector<34x128xf32>
    %28 = arith.mulf %23, %27 : vector<34x128xf32>
    %29 = vector.shape_cast %8 : vector<128xf32> to vector<1x128xf32>
    %30 = vector.broadcast %29 : vector<1x128xf32> to vector<34x128xf32>
    %31 = arith.mulf %28, %30 : vector<34x128xf32>
    %32 = vector.shape_cast %10 : vector<128xf32> to vector<1x128xf32>
    %33 = vector.broadcast %32 : vector<1x128xf32> to vector<34x128xf32>
    %34 = arith.addf %31, %33 : vector<34x128xf32>
    %35 = arith.truncf %34 : vector<34x128xf32> to vector<34x128xbf16>
    %c0_13 = arith.constant 0 : index
    %c0_14 = arith.constant 0 : index
    %36 = vector.load %arg4[%c0_13, %c0_14] : memref<128x384xbf16, #tpu.memory_space<vmem>>, vector<128x384xbf16>
    %cst_15 = arith.constant dense<0.000000e+00> : vector<34x384xf32>
    %37 = tpu.matmul %35, %36, %cst_15 {dimension_numbers = #tpu.dot_dimension_numbers<[1], [0], [0], [1], [0, 0, 1, 1], [], []>} : vector<34x128xbf16>, vector<128x384xbf16>, vector<34x384xf32> -> vector<34x384xf32>
    %38 = vector.extract_strided_slice %37 {offsets = [0, 0], sizes = [34, 128], strides = [1, 1]} : vector<34x384xf32> to vector<34x128xf32>
    %39 = vector.extract_strided_slice %0 {offsets = [2, 0], sizes = [1, 128], strides = [1, 1]} : vector<16x128xf32> to vector<1x128xf32>
    %40 = vector.shape_cast %39 : vector<1x128xf32> to vector<128xf32>
    %41 = vector.shape_cast %40 : vector<128xf32> to vector<1x128xf32>
    %42 = vector.broadcast %41 : vector<1x128xf32> to vector<34x128xf32>
    %43 = arith.addf %38, %42 : vector<34x128xf32>
    %44 = vector.extract_strided_slice %37 {offsets = [0, 128], sizes = [34, 128], strides = [1, 1]} : vector<34x384xf32> to vector<34x128xf32>
    %45 = vector.extract_strided_slice %0 {offsets = [3, 0], sizes = [1, 128], strides = [1, 1]} : vector<16x128xf32> to vector<1x128xf32>
    %46 = vector.shape_cast %45 : vector<1x128xf32> to vector<128xf32>
    %47 = vector.shape_cast %46 : vector<128xf32> to vector<1x128xf32>
    %48 = vector.broadcast %47 : vector<1x128xf32> to vector<34x128xf32>
    %49 = arith.addf %44, %48 : vector<34x128xf32>
    %50 = vector.extract_strided_slice %37 {offsets = [0, 256], sizes = [34, 128], strides = [1, 1]} : vector<34x384xf32> to vector<34x128xf32>
    %51 = vector.extract_strided_slice %0 {offsets = [4, 0], sizes = [1, 128], strides = [1, 1]} : vector<16x128xf32> to vector<1x128xf32>
    %52 = vector.shape_cast %51 : vector<1x128xf32> to vector<128xf32>
    %53 = vector.shape_cast %52 : vector<128xf32> to vector<1x128xf32>
    %54 = vector.broadcast %53 : vector<1x128xf32> to vector<34x128xf32>
    %55 = arith.addf %50, %54 : vector<34x128xf32>
    %56 = arith.truncf %43 : vector<34x128xf32> to vector<34x128xbf16>
    %57 = arith.truncf %49 : vector<34x128xf32> to vector<34x128xbf16>
    %cst_16 = arith.constant dense<0.000000e+00> : vector<34x34xf32>
    %58 = tpu.matmul %56, %57, %cst_16 {dimension_numbers = #tpu.dot_dimension_numbers<[1], [1], [0], [0], [0, 0, 1, 0], [], []>} : vector<34x128xbf16>, vector<34x128xbf16>, vector<34x34xf32> -> vector<34x34xf32>
    %cst_17 = arith.constant 0.0883883461 : f32
    %59 = vector.broadcast %cst_17 : f32 to vector<34x34xf32>
    %60 = arith.mulf %58, %59 : vector<34x34xf32>
    %61 = tpu.iota {dimensions = array<i32: 0>} : vector<34x34xi32>
    %62 = tpu.iota {dimensions = array<i32: 1>} : vector<34x34xi32>
    %c0_i32 = arith.constant 0 : i32
    %63 = vector.broadcast %c0_i32 : i32 to vector<34x34xi32>
    %c16_i32 = arith.constant 16 : i32
    %64 = vector.broadcast %c16_i32 : i32 to vector<34x34xi32>
    %65 = arith.cmpi sge, %61, %64 : vector<34x34xi32>
    %66 = arith.extui %65 : vector<34x34xi1> to vector<34x34xi32>
    %67 = arith.addi %63, %66 : vector<34x34xi32>
    %c32_i32 = arith.constant 32 : i32
    %68 = vector.broadcast %c32_i32 : i32 to vector<34x34xi32>
    %69 = arith.cmpi slt, %61, %68 : vector<34x34xi32>
    %c32_i32_18 = arith.constant 32 : i32
    %70 = vector.broadcast %c32_i32_18 : i32 to vector<34x34xi32>
    %71 = arith.subi %61, %70 : vector<34x34xi32>
    %72 = arith.select %69, %67, %71 : vector<34x34xi1>, vector<34x34xi32>
    %c0_i32_19 = arith.constant 0 : i32
    %73 = vector.broadcast %c0_i32_19 : i32 to vector<34x34xi32>
    %c16_i32_20 = arith.constant 16 : i32
    %74 = vector.broadcast %c16_i32_20 : i32 to vector<34x34xi32>
    %75 = arith.cmpi sge, %62, %74 : vector<34x34xi32>
    %76 = arith.extui %75 : vector<34x34xi1> to vector<34x34xi32>
    %77 = arith.addi %73, %76 : vector<34x34xi32>
    %c32_i32_21 = arith.constant 32 : i32
    %78 = vector.broadcast %c32_i32_21 : i32 to vector<34x34xi32>
    %79 = arith.cmpi slt, %62, %78 : vector<34x34xi32>
    %c32_i32_22 = arith.constant 32 : i32
    %80 = vector.broadcast %c32_i32_22 : i32 to vector<34x34xi32>
    %81 = arith.subi %62, %80 : vector<34x34xi32>
    %82 = arith.select %79, %77, %81 : vector<34x34xi1>, vector<34x34xi32>
    %83 = arith.cmpi eq, %72, %82 : vector<34x34xi32>
    %cst_23 = arith.constant -1.000000e+30 : f32
    %84 = vector.broadcast %cst_23 : f32 to vector<34x34xf32>
    %85 = arith.select %83, %60, %84 : vector<34x34xi1>, vector<34x34xf32>
    %cst_24 = arith.constant dense<0xFF800000> : vector<34xf32>
    %86 = vector.multi_reduction <maximumf>, %85, %cst_24 [1] : vector<34x34xf32> to vector<34xf32>
    %87 = vector.shape_cast %86 : vector<34xf32> to vector<34x1xf32>
    %88 = vector.broadcast %87 : vector<34x1xf32> to vector<34x34xf32>
    %89 = arith.subf %85, %88 : vector<34x34xf32>
    %90 = math.exp %89 : vector<34x34xf32>
    %cst_25 = arith.constant dense<0.000000e+00> : vector<34xf32>
    %91 = vector.multi_reduction <add>, %90, %cst_25 [1] : vector<34x34xf32> to vector<34xf32>
    %92 = vector.shape_cast %91 : vector<34xf32> to vector<34x1xf32>
    %93 = tpu.reciprocal %92 {approx = true} : vector<34x1xf32> -> vector<34x1xf32>
    %94 = vector.broadcast %93 : vector<34x1xf32> to vector<34x34xf32>
    %95 = arith.mulf %90, %94 : vector<34x34xf32>
    %96 = arith.truncf %95 : vector<34x34xf32> to vector<34x34xbf16>
    %97 = arith.truncf %55 : vector<34x128xf32> to vector<34x128xbf16>
    %cst_26 = arith.constant dense<0.000000e+00> : vector<34x128xf32>
    %98 = tpu.matmul %96, %97, %cst_26 {dimension_numbers = #tpu.dot_dimension_numbers<[1], [0], [0], [1], [0, 0, 1, 1], [], []>} : vector<34x34xbf16>, vector<34x128xbf16>, vector<34x128xf32> -> vector<34x128xf32>
    %99 = arith.truncf %98 : vector<34x128xf32> to vector<34x128xbf16>
    %c0_27 = arith.constant 0 : index
    %c0_28 = arith.constant 0 : index
    %100 = vector.load %arg5[%c0_27, %c0_28] : memref<128x128xbf16, #tpu.memory_space<vmem>>, vector<128x128xbf16>
    %cst_29 = arith.constant dense<0.000000e+00> : vector<34x128xf32>
    %101 = tpu.matmul %99, %100, %cst_29 {dimension_numbers = #tpu.dot_dimension_numbers<[1], [0], [0], [1], [0, 0, 1, 1], [], []>} : vector<34x128xbf16>, vector<128x128xbf16>, vector<34x128xf32> -> vector<34x128xf32>
    %102 = arith.addf %6, %101 : vector<34x128xf32>
    %103 = vector.extract_strided_slice %0 {offsets = [5, 0], sizes = [1, 128], strides = [1, 1]} : vector<16x128xf32> to vector<1x128xf32>
    %104 = vector.shape_cast %103 : vector<1x128xf32> to vector<128xf32>
    %105 = vector.shape_cast %104 : vector<128xf32> to vector<1x128xf32>
    %106 = vector.broadcast %105 : vector<1x128xf32> to vector<34x128xf32>
    %107 = arith.addf %102, %106 : vector<34x128xf32>
    %108 = vector.extract_strided_slice %0 {offsets = [6, 0], sizes = [1, 128], strides = [1, 1]} : vector<16x128xf32> to vector<1x128xf32>
    %109 = vector.shape_cast %108 : vector<1x128xf32> to vector<128xf32>
    %110 = vector.extract_strided_slice %0 {offsets = [7, 0], sizes = [1, 128], strides = [1, 1]} : vector<16x128xf32> to vector<1x128xf32>
    %111 = vector.shape_cast %110 : vector<1x128xf32> to vector<128xf32>
    %cst_30 = arith.constant dense<0.000000e+00> : vector<34xf32>
    %112 = vector.multi_reduction <add>, %107, %cst_30 [1] : vector<34x128xf32> to vector<34xf32>
    %113 = vector.shape_cast %112 : vector<34xf32> to vector<34x1xf32>
    %cst_31 = arith.constant 1.280000e+02 : f32
    %114 = vector.broadcast %cst_31 : f32 to vector<34x1xf32>
    %115 = arith.divf %113, %114 : vector<34x1xf32>
    %116 = vector.broadcast %115 : vector<34x1xf32> to vector<34x128xf32>
    %117 = arith.subf %107, %116 : vector<34x128xf32>
    %118 = arith.mulf %117, %117 : vector<34x128xf32>
    %cst_32 = arith.constant dense<0.000000e+00> : vector<34xf32>
    %119 = vector.multi_reduction <add>, %118, %cst_32 [1] : vector<34x128xf32> to vector<34xf32>
    %120 = vector.shape_cast %119 : vector<34xf32> to vector<34x1xf32>
    %cst_33 = arith.constant 1.280000e+02 : f32
    %121 = vector.broadcast %cst_33 : f32 to vector<34x1xf32>
    %122 = arith.divf %120, %121 : vector<34x1xf32>
    %123 = vector.broadcast %115 : vector<34x1xf32> to vector<34x128xf32>
    %124 = arith.subf %107, %123 : vector<34x128xf32>
    %cst_34 = arith.constant 9.99999997E-7 : f32
    %125 = vector.broadcast %cst_34 : f32 to vector<34x1xf32>
    %126 = arith.addf %122, %125 : vector<34x1xf32>
    %127 = math.rsqrt %126 : vector<34x1xf32>
    %128 = vector.broadcast %127 : vector<34x1xf32> to vector<34x128xf32>
    %129 = arith.mulf %124, %128 : vector<34x128xf32>
    %130 = vector.shape_cast %109 : vector<128xf32> to vector<1x128xf32>
    %131 = vector.broadcast %130 : vector<1x128xf32> to vector<34x128xf32>
    %132 = arith.mulf %129, %131 : vector<34x128xf32>
    %133 = vector.shape_cast %111 : vector<128xf32> to vector<1x128xf32>
    %134 = vector.broadcast %133 : vector<1x128xf32> to vector<34x128xf32>
    %135 = arith.addf %132, %134 : vector<34x128xf32>
    %136 = arith.truncf %135 : vector<34x128xf32> to vector<34x128xbf16>
    %c0_35 = arith.constant 0 : index
    %c0_36 = arith.constant 0 : index
    %137 = vector.load %arg6[%c0_35, %c0_36] : memref<128x512xbf16, #tpu.memory_space<vmem>>, vector<128x512xbf16>
    %cst_37 = arith.constant dense<0.000000e+00> : vector<34x512xf32>
    %138 = tpu.matmul %136, %137, %cst_37 {dimension_numbers = #tpu.dot_dimension_numbers<[1], [0], [0], [1], [0, 0, 1, 1], [], []>} : vector<34x128xbf16>, vector<128x512xbf16>, vector<34x512xf32> -> vector<34x512xf32>
    %c0_38 = arith.constant 0 : index
    %c0_39 = arith.constant 0 : index
    %139 = vector.load %arg7[%c0_38, %c0_39] : memref<1x512xf32, #tpu.memory_space<vmem>>, vector<1x512xf32>
    %140 = vector.broadcast %139 : vector<1x512xf32> to vector<34x512xf32>
    %141 = arith.addf %138, %140 : vector<34x512xf32>
    %cst_40 = arith.constant 5.000000e-01 : f32
    %142 = vector.broadcast %cst_40 : f32 to vector<34x512xf32>
    %143 = arith.mulf %142, %141 : vector<34x512xf32>
    %cst_41 = arith.constant 0.707106769 : f32
    %144 = vector.broadcast %cst_41 : f32 to vector<34x512xf32>
    %145 = arith.mulf %141, %144 : vector<34x512xf32>
    %cst_42 = arith.constant 0.000000e+00 : f32
    %146 = vector.broadcast %cst_42 : f32 to vector<34x512xf32>
    %147 = arith.cmpf oge, %145, %146 : vector<34x512xf32>
    %cst_43 = arith.constant 1.000000e+00 : f32
    %cst_44 = arith.constant -1.000000e+00 : f32
    %148 = vector.broadcast %cst_43 : f32 to vector<34x512xf32>
    %149 = vector.broadcast %cst_44 : f32 to vector<34x512xf32>
    %150 = arith.select %147, %148, %149 : vector<34x512xi1>, vector<34x512xf32>
    %151 = math.absf %145 : vector<34x512xf32>
    %cst_45 = arith.constant 0.327591091 : f32
    %152 = vector.broadcast %cst_45 : f32 to vector<34x512xf32>
    %153 = arith.mulf %152, %151 : vector<34x512xf32>
    %cst_46 = arith.constant 1.000000e+00 : f32
    %154 = vector.broadcast %cst_46 : f32 to vector<34x512xf32>
    %155 = arith.addf %154, %153 : vector<34x512xf32>
    %156 = tpu.reciprocal %155 {approx = true} : vector<34x512xf32> -> vector<34x512xf32>
    %cst_47 = arith.constant 1.06140542 : f32
    %157 = vector.broadcast %cst_47 : f32 to vector<34x512xf32>
    %158 = arith.mulf %157, %156 : vector<34x512xf32>
    %cst_48 = arith.constant -1.45315206 : f32
    %159 = vector.broadcast %cst_48 : f32 to vector<34x512xf32>
    %160 = arith.addf %158, %159 : vector<34x512xf32>
    %161 = arith.mulf %160, %156 : vector<34x512xf32>
    %cst_49 = arith.constant 1.42141378 : f32
    %162 = vector.broadcast %cst_49 : f32 to vector<34x512xf32>
    %163 = arith.addf %161, %162 : vector<34x512xf32>
    %164 = arith.mulf %163, %156 : vector<34x512xf32>
    %cst_50 = arith.constant -0.284496725 : f32
    %165 = vector.broadcast %cst_50 : f32 to vector<34x512xf32>
    %166 = arith.addf %164, %165 : vector<34x512xf32>
    %167 = arith.mulf %166, %156 : vector<34x512xf32>
    %cst_51 = arith.constant 0.254829586 : f32
    %168 = vector.broadcast %cst_51 : f32 to vector<34x512xf32>
    %169 = arith.addf %167, %168 : vector<34x512xf32>
    %170 = arith.mulf %169, %156 : vector<34x512xf32>
    %cst_52 = arith.constant 0.000000e+00 : f32
    %171 = vector.broadcast %cst_52 : f32 to vector<34x512xf32>
    %172 = arith.subf %171, %151 : vector<34x512xf32>
    %173 = arith.mulf %172, %151 : vector<34x512xf32>
    %174 = math.exp %173 : vector<34x512xf32>
    %175 = arith.mulf %170, %174 : vector<34x512xf32>
    %cst_53 = arith.constant 1.000000e+00 : f32
    %176 = vector.broadcast %cst_53 : f32 to vector<34x512xf32>
    %177 = arith.subf %176, %175 : vector<34x512xf32>
    %178 = arith.mulf %150, %177 : vector<34x512xf32>
    %cst_54 = arith.constant 1.000000e+00 : f32
    %179 = vector.broadcast %cst_54 : f32 to vector<34x512xf32>
    %180 = arith.addf %179, %178 : vector<34x512xf32>
    %181 = arith.mulf %143, %180 : vector<34x512xf32>
    %182 = arith.truncf %181 : vector<34x512xf32> to vector<34x512xbf16>
    %c0_55 = arith.constant 0 : index
    %c0_56 = arith.constant 0 : index
    %183 = vector.load %arg8[%c0_55, %c0_56] : memref<512x128xbf16, #tpu.memory_space<vmem>>, vector<512x128xbf16>
    %cst_57 = arith.constant dense<0.000000e+00> : vector<34x128xf32>
    %184 = tpu.matmul %182, %183, %cst_57 {dimension_numbers = #tpu.dot_dimension_numbers<[1], [0], [0], [1], [0, 0, 1, 1], [], []>} : vector<34x512xbf16>, vector<512x128xbf16>, vector<34x128xf32> -> vector<34x128xf32>
    %185 = arith.addf %107, %184 : vector<34x128xf32>
    %186 = vector.extract_strided_slice %0 {offsets = [8, 0], sizes = [1, 128], strides = [1, 1]} : vector<16x128xf32> to vector<1x128xf32>
    %187 = vector.shape_cast %186 : vector<1x128xf32> to vector<128xf32>
    %188 = vector.shape_cast %187 : vector<128xf32> to vector<1x128xf32>
    %189 = vector.broadcast %188 : vector<1x128xf32> to vector<34x128xf32>
    %190 = arith.addf %185, %189 : vector<34x128xf32>
    %191 = vector.extract_strided_slice %0 {offsets = [9, 0], sizes = [1, 128], strides = [1, 1]} : vector<16x128xf32> to vector<1x128xf32>
    %192 = vector.shape_cast %191 : vector<1x128xf32> to vector<128xf32>
    %193 = vector.extract_strided_slice %0 {offsets = [10, 0], sizes = [1, 128], strides = [1, 1]} : vector<16x128xf32> to vector<1x128xf32>
    %194 = vector.shape_cast %193 : vector<1x128xf32> to vector<128xf32>
    %cst_58 = arith.constant dense<0.000000e+00> : vector<34xf32>
    %195 = vector.multi_reduction <add>, %190, %cst_58 [1] : vector<34x128xf32> to vector<34xf32>
    %196 = vector.shape_cast %195 : vector<34xf32> to vector<34x1xf32>
    %cst_59 = arith.constant 1.280000e+02 : f32
    %197 = vector.broadcast %cst_59 : f32 to vector<34x1xf32>
    %198 = arith.divf %196, %197 : vector<34x1xf32>
    %199 = vector.broadcast %198 : vector<34x1xf32> to vector<34x128xf32>
    %200 = arith.subf %190, %199 : vector<34x128xf32>
    %201 = arith.mulf %200, %200 : vector<34x128xf32>
    %cst_60 = arith.constant dense<0.000000e+00> : vector<34xf32>
    %202 = vector.multi_reduction <add>, %201, %cst_60 [1] : vector<34x128xf32> to vector<34xf32>
    %203 = vector.shape_cast %202 : vector<34xf32> to vector<34x1xf32>
    %cst_61 = arith.constant 1.280000e+02 : f32
    %204 = vector.broadcast %cst_61 : f32 to vector<34x1xf32>
    %205 = arith.divf %203, %204 : vector<34x1xf32>
    %206 = vector.broadcast %198 : vector<34x1xf32> to vector<34x128xf32>
    %207 = arith.subf %190, %206 : vector<34x128xf32>
    %cst_62 = arith.constant 9.99999997E-7 : f32
    %208 = vector.broadcast %cst_62 : f32 to vector<34x1xf32>
    %209 = arith.addf %205, %208 : vector<34x1xf32>
    %210 = math.rsqrt %209 : vector<34x1xf32>
    %211 = vector.broadcast %210 : vector<34x1xf32> to vector<34x128xf32>
    %212 = arith.mulf %207, %211 : vector<34x128xf32>
    %213 = vector.shape_cast %192 : vector<128xf32> to vector<1x128xf32>
    %214 = vector.broadcast %213 : vector<1x128xf32> to vector<34x128xf32>
    %215 = arith.mulf %212, %214 : vector<34x128xf32>
    %216 = vector.shape_cast %194 : vector<128xf32> to vector<1x128xf32>
    %217 = vector.broadcast %216 : vector<1x128xf32> to vector<34x128xf32>
    %218 = arith.addf %215, %217 : vector<34x128xf32>
    %219 = vector.extract_strided_slice %218 {offsets = [0, 0], sizes = [32, 128], strides = [1, 1]} : vector<34x128xf32> to vector<32x128xf32>
    %c0_63 = arith.constant 0 : index
    %c0_64 = arith.constant 0 : index
    %c0_65 = arith.constant 0 : index
    %220 = vector.load %arg10[%c0_63, %c0_64, %c0_65] : memref<1x32x128xf32, #tpu.memory_space<vmem>>, vector<1x32x128xf32>
    %221 = vector.shape_cast %220 : vector<1x32x128xf32> to vector<32x128xf32>
    %222 = vector.shape_cast %219 : vector<32x128xf32> to vector<1x32x128xf32>
    tpu.vector_store %arg10[%c0_63, %c0_64, %c0_65], %222 {strides = array<i32>} : memref<1x32x128xf32, #tpu.memory_space<vmem>>, vector<1x32x128xf32>,
    return
  }
  func.func @transform_0(%arg0: i32) -> (i32, i32, i32) {
    %c0_i32 = arith.constant 0 : i32
    %c0_i32_0 = arith.constant 0 : i32
    %c0_i32_1 = arith.constant 0 : i32
    return %arg0, %c0_i32, %c0_i32_0 : i32, i32, i32
  }
  func.func @transform_1(%arg0: i32) -> (i32, i32) {
    %c0_i32 = arith.constant 0 : i32
    %c0_i32_0 = arith.constant 0 : i32
    %c0_i32_1 = arith.constant 0 : i32
    return %c0_i32, %c0_i32_0 : i32, i32
  }
  func.func @transform_2(%arg0: i32) -> (i32, i32) {
    %c0_i32 = arith.constant 0 : i32
    %c0_i32_0 = arith.constant 0 : i32
    %c0_i32_1 = arith.constant 0 : i32
    return %c0_i32, %c0_i32_0 : i32, i32
  }
  func.func @transform_3(%arg0: i32) -> (i32, i32) {
    %c0_i32 = arith.constant 0 : i32
    %c0_i32_0 = arith.constant 0 : i32
    %c0_i32_1 = arith.constant 0 : i32
    return %c0_i32, %c0_i32_0 : i32, i32
  }
  func.func @transform_4(%arg0: i32) -> (i32, i32) {
    %c0_i32 = arith.constant 0 : i32
    %c0_i32_0 = arith.constant 0 : i32
    %c0_i32_1 = arith.constant 0 : i32
    return %c0_i32, %c0_i32_0 : i32, i32
  }
  func.func @transform_5(%arg0: i32) -> (i32, i32) {
    %c0_i32 = arith.constant 0 : i32
    %c0_i32_0 = arith.constant 0 : i32
    %c0_i32_1 = arith.constant 0 : i32
    return %c0_i32, %c0_i32_0 : i32, i32
  }
  func.func @transform_6(%arg0: i32) -> (i32, i32) {
    %c0_i32 = arith.constant 0 : i32
    %c0_i32_0 = arith.constant 0 : i32
    %c0_i32_1 = arith.constant 0 : i32
    return %c0_i32, %c0_i32_0 : i32, i32
  }
  func.func @transform_7(%arg0: i32) -> (i32, i32) {
    %c0_i32 = arith.constant 0 : i32
    %c0_i32_0 = arith.constant 0 : i32
    %c0_i32_1 = arith.constant 0 : i32
    return %c0_i32, %c0_i32_0 : i32, i32
  }
  func.func @transform_8(%arg0: i32) -> (i32, i32) {
    %c0_i32 = arith.constant 0 : i32
    %c0_i32_0 = arith.constant 0 : i32
    %c0_i32_1 = arith.constant 0 : i32
    return %c0_i32, %c0_i32_0 : i32, i32
  }
  func.func @transform_9(%arg0: i32) -> (i32, i32, i32) {
    %c0_i32 = arith.constant 0 : i32
    %c0_i32_0 = arith.constant 0 : i32
    %c0_i32_1 = arith.constant 0 : i32
    return %arg0, %c0_i32, %c0_i32_0 : i32, i32, i32
  }
}

</mosaic_0001>

<llo_original>
// kernel: hist_encoder_forward.1
$region0: #{hist_encoder_forward.1}
  #allocation0 [shape = 'u32[]', space=smem, size = 0x4, offset = 0x4, fixed_abs, tag = 'smem constant byte address 0x4 - core index']
  #allocation1 [shape = 'u32[144,128]{1,0:T(1,128)}', space=vmem, size = 0x12000, scoped, tag = 'internal scratch']
  %s0 = inlined_call_operand.vmem [shape: bf16[1,34,128], index: 0, kind: input, shape index: {}]
  %s1 = inlined_call_operand.vmem [shape: f32[34,128], index: 1, kind: input, shape index: {}]
  %s2 = inlined_call_operand.vmem [shape: bf16[128,128], index: 2, kind: input, shape index: {}]
  %s3 = inlined_call_operand.vmem [shape: bf16[128,384], index: 3, kind: input, shape index: {}]
  %s4 = inlined_call_operand.vmem [shape: bf16[128,128], index: 4, kind: input, shape index: {}]
  %s5 = inlined_call_operand.vmem [shape: bf16[128,512], index: 5, kind: input, shape index: {}]
  %s6 = inlined_call_operand.vmem [shape: f32[1,512], index: 6, kind: input, shape index: {}]
  %s7 = inlined_call_operand.vmem [shape: bf16[512,128], index: 7, kind: input, shape index: {}]
  %s8 = inlined_call_operand.vmem [shape: f32[16,128], index: 8, kind: input, shape index: {}]
  %s9 = inlined_call_operand.hbm [shape: f32[1,32,128], index: 9, kind: output, shape index: {}]
  %s10 = sld [smem:[#allocation0]]
  $region46: #{hist_encoder_forward.1} parent=0
    _
  %s12 = ssub.s32 1, %s10
  %s13 = scalar_select 0, %s12, %s10
  $region1: #{hist_encoder_forward.1} parent=0
    #allocation2 [shape = 'u8[16384]{0}', space=vmem, size = 0x4000, scoped, tag = 'output window, operand 0, single buffered']
    #allocation3 [shape = 's32[1]{0}', space=sflag, size = 0x4, scoped, tag = 'scoped memory for hist_encoder_forward.1']
    %14 = vsyncpa [#allocation3], 0
    // Predicated region
    $region2: #{hist_encoder_forward.1} parent=1 // pred_check
      _
    $region3: #{hist_encoder_forward.1} parent=1 // pred_check_branch
      %16 = sbr.rel (0) target = $region5
    $region4: #{hist_encoder_forward.1} parent=1 // pred_region
      _
    $region5: #{hist_encoder_forward.1} parent=1 // pred_fallthru
      _
    // Predicated region
    $region6: #{hist_encoder_forward.1} parent=1 // pred_check
      _
    $region7: #{hist_encoder_forward.1} parent=1 // pred_check_branch
      %18 = sbr.rel (0) target = $region9
    $region8: #{hist_encoder_forward.1} parent=1 // pred_region
      _
    $region9: #{hist_encoder_forward.1} parent=1 // pred_fallthru
      _
    // Predicated region
    $region10: #{hist_encoder_forward.1} parent=1 // pred_check
      _
    $region11: #{hist_encoder_forward.1} parent=1 // pred_check_branch
      %20 = sbr.rel (0) target = $region13
    $region12: #{hist_encoder_forward.1} parent=1 // pred_region
      _
    $region13: #{hist_encoder_forward.1} parent=1 // pred_fallthru
      _
    // Predicated region
    $region14: #{hist_encoder_forward.1} parent=1 // pred_check
      _
    $region15: #{hist_encoder_forward.1} parent=1 // pred_check_branch
      %22 = sbr.rel (0) target = $region17
    $region16: #{hist_encoder_forward.1} parent=1 // pred_region
      _
    $region17: #{hist_encoder_forward.1} parent=1 // pred_fallthru
      _
    // Predicated region
    $region18: #{hist_encoder_forward.1} parent=1 // pred_check
      _
    $region19: #{hist_encoder_forward.1} parent=1 // pred_check_branch
      %24 = sbr.rel (0) target = $region21
    $region20: #{hist_encoder_forward.1} parent=1 // pred_region
      _
    $region21: #{hist_encoder_forward.1} parent=1 // pred_fallthru
      _
    // Predicated region
    $region22: #{hist_encoder_forward.1} parent=1 // pred_check
      _
    $region23: #{hist_encoder_forward.1} parent=1 // pred_check_branch
      %26 = sbr.rel (0) target = $region25
    $region24: #{hist_encoder_forward.1} parent=1 // pred_region
      _
    $region25: #{hist_encoder_forward.1} parent=1 // pred_fallthru
      _
    // Predicated region
    $region26: #{hist_encoder_forward.1} parent=1 // pred_check
      _
    $region27: #{hist_encoder_forward.1} parent=1 // pred_check_branch
      %28 = sbr.rel (0) target = $region29
    $region28: #{hist_encoder_forward.1} parent=1 // pred_region
      _
    $region29: #{hist_encoder_forward.1} parent=1 // pred_fallthru
      _
    // Predicated region
    $region30: #{hist_encoder_forward.1} parent=1 // pred_check
      _
    $region31: #{hist_encoder_forward.1} parent=1 // pred_check_branch
      %30 = sbr.rel (0) target = $region33
    $region32: #{hist_encoder_forward.1} parent=1 // pred_region
      _
    $region33: #{hist_encoder_forward.1} parent=1 // pred_fallthru
      _
    // Predicated region
    $region34: #{hist_encoder_forward.1} parent=1 // pred_check
      _
    $region35: #{hist_encoder_forward.1} parent=1 // pred_check_branch
      %32 = sbr.rel (0) target = $region37
    $region36: #{hist_encoder_forward.1} parent=1 // pred_region
      _
    $region37: #{hist_encoder_forward.1} parent=1 // pred_fallthru
      _
    %v34 = vld [vmem:[%s8] sm:$0xff]
    %v35 = vld [vmem:[%s8 + $0x8] sm:$0xff]
    %v36 = vld [vmem:[%s0] sm:$0xf]
    %v37 = vld [vmem:[%s0 + $0x4] sm:$0xf]
    %v38 = vld [vmem:[%s0 + $0x8] sm:$0xf]
    %v39 = vld [vmem:[%s0 + $0xc] sm:$0xf]
    %v40 = vld [vmem:[%s0 + $0x10] sm:$0x1]
    %v41 = vld [vmem:[%s2] sm:$0xf]
    %v42 = vld [vmem:[%s2 + $0x4] sm:$0xf]
    %v43 = vld [vmem:[%s2 + $0x8] sm:$0xf]
    %v44 = vld [vmem:[%s2 + $0xc] sm:$0xf]
    %v45 = vld [vmem:[%s2 + $0x10] sm:$0xf]
    %v46 = vld [vmem:[%s2 + $0x14] sm:$0xf]
    %v47 = vld [vmem:[%s2 + $0x18] sm:$0xf]
    %v48 = vld [vmem:[%s2 + $0x1c] sm:$0xf]
    %v49 = vld [vmem:[%s2 + $0x20] sm:$0xf]
    %v50 = vld [vmem:[%s2 + $0x24] sm:$0xf]
    %v51 = vld [vmem:[%s2 + $0x28] sm:$0xf]
    %v52 = vld [vmem:[%s2 + $0x2c] sm:$0xf]
    %v53 = vld [vmem:[%s2 + $0x30] sm:$0xf]
    %v54 = vld [vmem:[%s2 + $0x34] sm:$0xf]
    %v55 = vld [vmem:[%s2 + $0x38] sm:$0xf]
    %v56 = vld [vmem:[%s2 + $0x3c] sm:$0xf]
    %v57 = vld [vmem:[%s1] sm:$0xff]
    %v58 = vld [vmem:[%s1 + $0x8] sm:$0xff]
    %v59 = vld [vmem:[%s1 + $0x10] sm:$0xff]
    %v60 = vld [vmem:[%s1 + $0x18] sm:$0xff]
    %v61 = vld [vmem:[%s1 + $0x20] sm:$0x3]
    %v67 = vunpack.c.l.b16 %v36
    %v68 = vunpack.c.l.b16 %v37
    %v69 = vunpack.c.l.b16 %v38
    %v70 = vunpack.c.l.b16 %v39
    %v71 = vunpack.c.l.b16 %v40
    %v72 = vpack.c.b16 %v68, %v67
    %v73 = vpack.c.b16 %v70, %v69
    %v74 = vpack.c.b16 %v71, %v71
    %v94 = vunpack.c.l.b16 %v41
    %v95 = vunpack.c.l.b16 %v42
    %v96 = vunpack.c.l.b16 %v43
    %v97 = vunpack.c.l.b16 %v44
    %v98 = vunpack.c.l.b16 %v45
    %v99 = vunpack.c.l.b16 %v46
    %v100 = vunpack.c.l.b16 %v47
    %v101 = vunpack.c.l.b16 %v48
    %v102 = vunpack.c.l.b16 %v49
    %v103 = vunpack.c.l.b16 %v50
    %v104 = vunpack.c.l.b16 %v51
    %v105 = vunpack.c.l.b16 %v52
    %v106 = vunpack.c.l.b16 %v53
    %v107 = vunpack.c.l.b16 %v54
    %v108 = vunpack.c.l.b16 %v55
    %v109 = vunpack.c.l.b16 %v56
    %v110 = vpack.c.b16 %v95, %v94
    %v111 = vpack.c.b16 %v97, %v96
    %v112 = vpack.c.b16 %v99, %v98
    %v113 = vpack.c.b16 %v101, %v100
    %v114 = vpack.c.b16 %v103, %v102
    %v115 = vpack.c.b16 %v105, %v104
    %v116 = vpack.c.b16 %v107, %v106
    %v117 = vpack.c.b16 %v109, %v108
    %126 = vmatprep.subr.bf16.mxu0 0
    %127 = vmatpush1.bf16.msra.mxu0 %v117
    %128 = vmatprep.subr.bf16.mxu0 0
    %129 = vmatpush1.bf16.msra.mxu0 %v116
    %130 = vmatprep.subr.bf16.mxu0 0
    %131 = vmatpush1.bf16.msra.mxu0 %v115
    %132 = vmatprep.subr.bf16.mxu0 0
    %133 = vmatpush1.bf16.msra.mxu0 %v114
    %134 = vmatprep.subr.bf16.mxu0 0
    %135 = vmatpush1.bf16.msra.mxu0 %v113
    %136 = vmatprep.subr.bf16.mxu0 0
    %137 = vmatpush1.bf16.msra.mxu0 %v112
    %138 = vmatprep.subr.bf16.mxu0 0
    %139 = vmatpush1.bf16.msra.mxu0 %v111
    %140 = vmatprep.subr.bf16.mxu0 0
    %141 = vmatpush1.bf16.msra.mxu0 %v110
    %142 = vmatprep.subr.bf16.mxu0 0
    %143 = vmatpush2.bf16.msra.mxu0 0
    %144 = vmatprep.subr.bf16.mxu0 0
    %145 = vmatpush2.bf16.msra.mxu0 0
    %146 = vmatprep.subr.bf16.mxu0 0
    %147 = vmatpush2.bf16.msra.mxu0 0
    %148 = vmatprep.subr.bf16.mxu0 0
    %149 = vmatpush2.bf16.msra.mxu0 0
    %150 = vmatprep.subr.bf16.mxu0 0
    %151 = vmatpush2.bf16.msra.mxu0 0
    %152 = vmatprep.subr.bf16.mxu0 0
    %153 = vmatpush2.bf16.msra.mxu0 0
    %154 = vmatprep.subr.bf16.mxu0 0
    %155 = vmatpush2.bf16.msra.mxu0 0
    %156 = vmatprep.subr.bf16.mxu0 0
    %157 = vmatpush2.bf16.msra.mxu0 0
    %158 = vmatprep.mubr.bf16.mxu0 0
    %159 = vmatmul.mubr.bf16.gmra.mxu0 %v72
    %v160 = vpop.f32.mrf.mxu0
    %v161 = vadd.f32 %v57, %v160
    %v162 = vpop.f32.mrf.mxu0
    %v163 = vpop.f32.mrf.mxu0
    %v164 = vadd.f32 %v58, %v163
    %v165 = vpop.f32.mrf.mxu0
    %166 = vmatprep.mubr.bf16.mxu0 0
    %167 = vmatmul.mubr.bf16.gmra.mxu0 %v73
    %v168 = vpop.f32.mrf.mxu0
    %v169 = vadd.f32 %v59, %v168
    %v170 = vpop.f32.mrf.mxu0
    %v171 = vpop.f32.mrf.mxu0
    %v172 = vadd.f32 %v60, %v171
    %v173 = vpop.f32.mrf.mxu0
    %174 = vmatprep.mubr.bf16.mxu0 0
    %175 = vmatmul.mubr.bf16.gmra.mxu0 %v74
    %v176 = vpop.f32.mrf.mxu0
    %v177 = vadd.f32 %v61, %v176
    %v178 = vpop.f32.mrf.mxu0
    %v179 = vpop.f32.mrf.mxu0
    %v180 = vpop.f32.mrf.mxu0
    %181 = vdwg.mxu0
    %182 = vadd.xlane.f32.xlu0 %v161
    %v183 = vpop.xlane.xlu0 %182
    %184 = vadd.xlane.f32.xlu0 %v164
    %v185 = vpop.xlane.xlu0 %184
    %186 = vadd.xlane.f32.xlu0 %v169
    %v187 = vpop.xlane.xlu0 %186
    %188 = vadd.xlane.f32.xlu0 %v172
    %v189 = vpop.xlane.xlu0 %188
    %vm190 = vcmask 1041408
    %v191 = vsel %vm190, %v177, 0.0
    %192 = vadd.xlane.f32.xlu0 %v191
    %v193 = vpop.xlane.xlu0 %192
    %v194 = vrcp.pop 128.0
    %v195 = vmul.f32 %v183, %v194
    %v196 = vmul.f32 %v185, %v194
    %v197 = vmul.f32 %v187, %v194
    %v198 = vmul.f32 %v189, %v194
    %v199 = vmul.f32 %v193, %v194
    %v200 = vsub.f32 %v161, %v195
    %v201 = vsub.f32 %v164, %v196
    %v202 = vsub.f32 %v169, %v197
    %v203 = vsub.f32 %v172, %v198
    %v204 = vsub.f32 %v177, %v199
    %v205 = vmul.f32 %v200, %v200
    %v206 = vmul.f32 %v201, %v201
    %v207 = vmul.f32 %v202, %v202
    %v208 = vmul.f32 %v203, %v203
    %v209 = vmul.f32 %v204, %v204
    %210 = vadd.xlane.f32.xlu0 %v205
    %v211 = vpop.xlane.xlu0 %210
    %212 = vadd.xlane.f32.xlu0 %v206
    %v213 = vpop.xlane.xlu0 %212
    %214 = vadd.xlane.f32.xlu0 %v207
    %v215 = vpop.xlane.xlu0 %214
    %216 = vadd.xlane.f32.xlu0 %v208
    %v217 = vpop.xlane.xlu0 %216
    %v218 = vsel %vm190, %v209, 0.0
    %219 = vadd.xlane.f32.xlu0 %v218
    %v220 = vpop.xlane.xlu0 %219
    %v221 = vmul.f32 %v211, %v194
    %v222 = vmul.f32 %v213, %v194
    %v223 = vmul.f32 %v215, %v194
    %v224 = vmul.f32 %v217, %v194
    %v225 = vmul.f32 %v220, %v194
    %v226 = vadd.f32 %v221, 1e-06
    %v227 = vadd.f32 %v222, 1e-06
    %v228 = vadd.f32 %v223, 1e-06
    %v229 = vadd.f32 %v224, 1e-06
    %v230 = vadd.f32 %v225, 1e-06
    %v231 = vrsqrt.pop %v226
    %v232 = vrsqrt.pop %v227
    %v233 = vrsqrt.pop %v228
    %v234 = vrsqrt.pop %v229
    %v235 = vrsqrt.pop %v230
    %v236 = vmul.f32 %v200, %v231
    %v237 = vmul.f32 %v201, %v232
    %v238 = vmul.f32 %v202, %v233
    %v239 = vmul.f32 %v203, %v234
    %v240 = vmul.f32 %v204, %v235
    %v241 = vlaneseq
    %v242 = vshrl.u32 %v241, 7
    %v243 = vsub.s32 0, %v242
    %v244 = vrot.slane %v34, %v243
    %v245 = vmul.f32 %v236, %v244
    %v246 = vmul.f32 %v237, %v244
    %v247 = vmul.f32 %v238, %v244
    %v248 = vmul.f32 %v239, %v244
    %v249 = vmul.f32 %v240, %v244
    %v250 = vlaneseq
    %v251 = vshrl.u32 %v250, 7
    %v252 = vsub.s32 1, %v251
    %v253 = vrot.slane %v34, %v252
    %v254 = vadd.f32 %v245, %v253
    %v255 = vadd.f32 %v246, %v253
    %v256 = vadd.f32 %v247, %v253
    %v257 = vadd.f32 %v248, %v253
    %v258 = vadd.f32 %v249, %v253
    %v259 = vpack.c.bf16 %v255, %v254
    %v260 = vpack.c.bf16 %v257, %v256
    %v261 = vpack.c.bf16 %v258, %v258
    %v262 = vld [vmem:[%s3] sm:$0xff]
    %v263 = vld [vmem:[%s3 + $0x8] sm:$0xf]
    %v264 = vld [vmem:[%s3 + $0xc] sm:$0xff]
    %v265 = vld [vmem:[%s3 + $0x14] sm:$0xf]
    %v266 = vld [vmem:[%s3 + $0x18] sm:$0xff]
    %v267 = vld [vmem:[%s3 + $0x20] sm:$0xf]
    %v268 = vld [vmem:[%s3 + $0x24] sm:$0xff]
    %v269 = vld [vmem:[%s3 + $0x2c] sm:$0xf]
    %v270 = vld [vmem:[%s3 + $0x30] sm:$0xff]
    %v271 = vld [vmem:[%s3 + $0x38] sm:$0xf]
    %v272 = vld [vmem:[%s3 + $0x3c] sm:$0xff]
    %v273 = vld [vmem:[%s3 + $0x44] sm:$0xf]
    %v274 = vld [vmem:[%s3 + $0x48] sm:$0xff]
    %v275 = vld [vmem:[%s3 + $0x50] sm:$0xf]
    %v276 = vld [vmem:[%s3 + $0x54] sm:$0xff]
    %v277 = vld [vmem:[%s3 + $0x5c] sm:$0xf]
    %v278 = vld [vmem:[%s3 + $0x60] sm:$0xff]
    %v279 = vld [vmem:[%s3 + $0x68] sm:$0xf]
    %v280 = vld [vmem:[%s3 + $0x6c] sm:$0xff]
    %v281 = vld [vmem:[%s3 + $0x74] sm:$0xf]
    %v282 = vld [vmem:[%s3 + $0x78] sm:$0xff]
    %v283 = vld [vmem:[%s3 + $0x80] sm:$0xf]
    %v284 = vld [vmem:[%s3 + $0x84] sm:$0xff]
    %v285 = vld [vmem:[%s3 + $0x8c] sm:$0xf]
    %v286 = vld [vmem:[%s3 + $0x90] sm:$0xff]
    %v287 = vld [vmem:[%s3 + $0x98] sm:$0xf]
    %v288 = vld [vmem:[%s3 + $0x9c] sm:$0xff]
    %v289 = vld [vmem:[%s3 + $0xa4] sm:$0xf]
    %v290 = vld [vmem:[%s3 + $0xa8] sm:$0xff]
    %v291 = vld [vmem:[%s3 + $0xb0] sm:$0xf]
    %v292 = vld [vmem:[%s3 + $0xb4] sm:$0xff]
    %v293 = vld [vmem:[%s3 + $0xbc] sm:$0xf]
    %v326 = vunpack.c.l.b16 %v262
    %v327 = vunpack.c.h.b16 %v262
    %v328 = vunpack.c.l.b16 %v263
    %v329 = vunpack.c.l.b16 %v264
    %v330 = vunpack.c.h.b16 %v264
    %v331 = vunpack.c.l.b16 %v265
    %v332 = vunpack.c.l.b16 %v266
    %v333 = vunpack.c.h.b16 %v266
    %v334 = vunpack.c.l.b16 %v267
    %v335 = vunpack.c.l.b16 %v268
    %v336 = vunpack.c.h.b16 %v268
    %v337 = vunpack.c.l.b16 %v269
    %v338 = vunpack.c.l.b16 %v270
    %v339 = vunpack.c.h.b16 %v270
    %v340 = vunpack.c.l.b16 %v271
    %v341 = vunpack.c.l.b16 %v272
    %v342 = vunpack.c.h.b16 %v272
    %v343 = vunpack.c.l.b16 %v273
    %v344 = vunpack.c.l.b16 %v274
    %v345 = vunpack.c.h.b16 %v274
    %v346 = vunpack.c.l.b16 %v275
    %v347 = vunpack.c.l.b16 %v276
    %v348 = vunpack.c.h.b16 %v276
    %v349 = vunpack.c.l.b16 %v277
    %v350 = vunpack.c.l.b16 %v278
    %v351 = vunpack.c.h.b16 %v278
    %v352 = vunpack.c.l.b16 %v279
    %v353 = vunpack.c.l.b16 %v280
    %v354 = vunpack.c.h.b16 %v280
    %v355 = vunpack.c.l.b16 %v281
    %v356 = vunpack.c.l.b16 %v282
    %v357 = vunpack.c.h.b16 %v282
    %v358 = vunpack.c.l.b16 %v283
    %v359 = vunpack.c.l.b16 %v284
    %v360 = vunpack.c.h.b16 %v284
    %v361 = vunpack.c.l.b16 %v285
    %v362 = vunpack.c.l.b16 %v286
    %v363 = vunpack.c.h.b16 %v286
    %v364 = vunpack.c.l.b16 %v287
    %v365 = vunpack.c.l.b16 %v288
    %v366 = vunpack.c.h.b16 %v288
    %v367 = vunpack.c.l.b16 %v289
    %v368 = vunpack.c.l.b16 %v290
    %v369 = vunpack.c.h.b16 %v290
    %v370 = vunpack.c.l.b16 %v291
    %v371 = vunpack.c.l.b16 %v292
    %v372 = vunpack.c.h.b16 %v292
    %v373 = vunpack.c.l.b16 %v293
    %v374 = vpack.c.b16 %v329, %v326
    %v375 = vpack.c.b16 %v330, %v327
    %v376 = vpack.c.b16 %v331, %v328
    %v377 = vpack.c.b16 %v335, %v332
    %v378 = vpack.c.b16 %v336, %v333
    %v379 = vpack.c.b16 %v337, %v334
    %v380 = vpack.c.b16 %v341, %v338
    %v381 = vpack.c.b16 %v342, %v339
    %v382 = vpack.c.b16 %v343, %v340
    %v383 = vpack.c.b16 %v347, %v344
    %v384 = vpack.c.b16 %v348, %v345
    %v385 = vpack.c.b16 %v349, %v346
    %v386 = vpack.c.b16 %v353, %v350
    %v387 = vpack.c.b16 %v354, %v351
    %v388 = vpack.c.b16 %v355, %v352
    %v389 = vpack.c.b16 %v359, %v356
    %v390 = vpack.c.b16 %v360, %v357
    %v391 = vpack.c.b16 %v361, %v358
    %v392 = vpack.c.b16 %v365, %v362
    %v393 = vpack.c.b16 %v366, %v363
    %v394 = vpack.c.b16 %v367, %v364
    %v395 = vpack.c.b16 %v371, %v368
    %v396 = vpack.c.b16 %v372, %v369
    %v397 = vpack.c.b16 %v373, %v370
    %422 = vmatprep.subr.bf16.mxu0 %v396
    %423 = vmatpush1.bf16.msra.mxu0 %v395
    %424 = vmatprep.subr.bf16.mxu0 %v393
    %425 = vmatpush1.bf16.msra.mxu0 %v392
    %426 = vmatprep.subr.bf16.mxu0 %v390
    %427 = vmatpush1.bf16.msra.mxu0 %v389
    %428 = vmatprep.subr.bf16.mxu0 %v387
    %429 = vmatpush1.bf16.msra.mxu0 %v386
    %430 = vmatprep.subr.bf16.mxu0 %v384
    %431 = vmatpush1.bf16.msra.mxu0 %v383
    %432 = vmatprep.subr.bf16.mxu0 %v381
    %433 = vmatpush1.bf16.msra.mxu0 %v380
    %434 = vmatprep.subr.bf16.mxu0 %v378
    %435 = vmatpush1.bf16.msra.mxu0 %v377
    %436 = vmatprep.subr.bf16.mxu0 %v375
    %437 = vmatpush1.bf16.msra.mxu0 %v374
    %438 = vmatprep.subr.bf16.mxu0 0
    %439 = vmatpush2.bf16.msra.mxu0 0
    %440 = vmatprep.subr.bf16.mxu0 0
    %441 = vmatpush2.bf16.msra.mxu0 0
    %442 = vmatprep.subr.bf16.mxu0 0
    %443 = vmatpush2.bf16.msra.mxu0 0
    %444 = vmatprep.subr.bf16.mxu0 0
    %445 = vmatpush2.bf16.msra.mxu0 0
    %446 = vmatprep.subr.bf16.mxu0 0
    %447 = vmatpush2.bf16.msra.mxu0 0
    %448 = vmatprep.subr.bf16.mxu0 0
    %449 = vmatpush2.bf16.msra.mxu0 0
    %450 = vmatprep.subr.bf16.mxu0 0
    %451 = vmatpush2.bf16.msra.mxu0 0
    %452 = vmatprep.subr.bf16.mxu0 0
    %453 = vmatpush2.bf16.msra.mxu0 0
    %454 = vmatprep.mubr.bf16.mxu0 0
    %455 = vmatmul.mubr.bf16.gmra.mxu0 %v259
    %v456 = vpop.f32.mrf.mxu0
    %v457 = vadd.f32 0.0, %v456
    %v458 = vpop.f32.mrf.mxu0
    %v459 = vadd.f32 0.0, %v458
    %v460 = vpop.f32.mrf.mxu0
    %v461 = vadd.f32 0.0, %v460
    %v462 = vpop.f32.mrf.mxu0
    %v463 = vadd.f32 0.0, %v462
    %464 = vmatprep.mubr.bf16.mxu0 0
    %465 = vmatmul.mubr.bf16.gmra.mxu0 %v260
    %v466 = vpop.f32.mrf.mxu0
    %v467 = vadd.f32 0.0, %v466
    %v468 = vpop.f32.mrf.mxu0
    %v469 = vadd.f32 0.0, %v468
    %v470 = vpop.f32.mrf.mxu0
    %v471 = vadd.f32 0.0, %v470
    %v472 = vpop.f32.mrf.mxu0
    %v473 = vadd.f32 0.0, %v472
    %474 = vmatprep.mubr.bf16.mxu0 0
    %475 = vmatmul.mubr.bf16.gmra.mxu0 %v261
    %v476 = vpop.f32.mrf.mxu0
    %v477 = vadd.f32 0.0, %v476
    %v478 = vpop.f32.mrf.mxu0
    %v479 = vadd.f32 0.0, %v478
    %v480 = vpop.f32.mrf.mxu0
    %v481 = vpop.f32.mrf.mxu0
    %482 = vdwg.mxu0
    %483 = vmatprep.subr.bf16.mxu0 0
    %484 = vmatpush1.bf16.msra.mxu0 %v397
    %485 = vmatprep.subr.bf16.mxu0 0
    %486 = vmatpush1.bf16.msra.mxu0 %v394
    %487 = vmatprep.subr.bf16.mxu0 0
    %488 = vmatpush1.bf16.msra.mxu0 %v391
    %489 = vmatprep.subr.bf16.mxu0 0
    %490 = vmatpush1.bf16.msra.mxu0 %v388
    %491 = vmatprep.subr.bf16.mxu0 0
    %492 = vmatpush1.bf16.msra.mxu0 %v385
    %493 = vmatprep.subr.bf16.mxu0 0
    %494 = vmatpush1.bf16.msra.mxu0 %v382
    %495 = vmatprep.subr.bf16.mxu0 0
    %496 = vmatpush1.bf16.msra.mxu0 %v379
    %497 = vmatprep.subr.bf16.mxu0 0
    %498 = vmatpush1.bf16.msra.mxu0 %v376
    %499 = vmatprep.subr.bf16.mxu0 0
    %500 = vmatpush2.bf16.msra.mxu0 0
    %501 = vmatprep.subr.bf16.mxu0 0
    %502 = vmatpush2.bf16.msra.mxu0 0
    %503 = vmatprep.subr.bf16.mxu0 0
    %504 = vmatpush2.bf16.msra.mxu0 0
    %505 = vmatprep.subr.bf16.mxu0 0
    %506 = vmatpush2.bf16.msra.mxu0 0
    %507 = vmatprep.subr.bf16.mxu0 0
    %508 = vmatpush2.bf16.msra.mxu0 0
    %509 = vmatprep.subr.bf16.mxu0 0
    %510 = vmatpush2.bf16.msra.mxu0 0
    %511 = vmatprep.subr.bf16.mxu0 0
    %512 = vmatpush2.bf16.msra.mxu0 0
    %513 = vmatprep.subr.bf16.mxu0 0
    %514 = vmatpush2.bf16.msra.mxu0 0
    %515 = vmatprep.mubr.bf16.mxu0 0
    %516 = vmatmul.mubr.bf16.gmra.mxu0 %v259
    %v517 = vpop.f32.mrf.mxu0
    %v518 = vadd.f32 0.0, %v517
    %v519 = vpop.f32.mrf.mxu0
    %v520 = vpop.f32.mrf.mxu0
    %v521 = vadd.f32 0.0, %v520
    %v522 = vpop.f32.mrf.mxu0
    %523 = vmatprep.mubr.bf16.mxu0 0
    %524 = vmatmul.mubr.bf16.gmra.mxu0 %v260
    %v525 = vpop.f32.mrf.mxu0
    %v526 = vadd.f32 0.0, %v525
    %v527 = vpop.f32.mrf.mxu0
    %v528 = vpop.f32.mrf.mxu0
    %v529 = vadd.f32 0.0, %v528
    %v530 = vpop.f32.mrf.mxu0
    %531 = vmatprep.mubr.bf16.mxu0 0
    %532 = vmatmul.mubr.bf16.gmra.mxu0 %v261
    %v533 = vpop.f32.mrf.mxu0
    %v534 = vadd.f32 0.0, %v533
    %v535 = vpop.f32.mrf.mxu0
    %v536 = vpop.f32.mrf.mxu0
    %v537 = vpop.f32.mrf.mxu0
    %538 = vdwg.mxu0
    %v539 = vlaneseq
    %v540 = vshrl.u32 %v539, 7
    %v541 = vsub.s32 2, %v540
    %v542 = vrot.slane %v34, %v541
    %v543 = vadd.f32 %v457, %v542
    %v544 = vadd.f32 %v461, %v542
    %v545 = vadd.f32 %v467, %v542
    %v546 = vadd.f32 %v471, %v542
    %v547 = vadd.f32 %v477, %v542
    %v548 = vlaneseq
    %v549 = vshrl.u32 %v548, 7
    %v550 = vsub.s32 3, %v549
    %v551 = vrot.slane %v34, %v550
    %v552 = vadd.f32 %v459, %v551
    %v553 = vadd.f32 %v463, %v551
    %v554 = vadd.f32 %v469, %v551
    %v555 = vadd.f32 %v473, %v551
    %v556 = vadd.f32 %v479, %v551
    %v557 = vlaneseq
    %v558 = vshrl.u32 %v557, 7
    %v559 = vsub.s32 4, %v558
    %v560 = vrot.slane %v34, %v559
    %v561 = vadd.f32 %v518, %v560
    %v562 = vadd.f32 %v521, %v560
    %v563 = vadd.f32 %v526, %v560
    %v564 = vadd.f32 %v529, %v560
    %v565 = vadd.f32 %v534, %v560
    %v566 = vpack.c.bf16 %v544, %v543
    %v567 = vpack.c.bf16 %v546, %v545
    %v568 = vpack.c.bf16 %v547, %v547
    %v569 = vpack.c.bf16 %v553, %v552
    %v570 = vpack.c.bf16 %v555, %v554
    %v571 = vpack.c.bf16 %v556, %v556
    %572 = vmatprep.subr.bf16.mxu0 0
    %573 = vmatpush1.bf16.xpose.msra.mxu0 0
    %574 = vmatprep.subr.bf16.mxu0 0
    %575 = vmatpush1.bf16.xpose.msra.mxu0 0
    %576 = vmatprep.subr.bf16.mxu0 0
    %577 = vmatpush1.bf16.xpose.msra.mxu0 0
    %578 = vmatprep.subr.bf16.mxu0 0
    %579 = vmatpush1.bf16.xpose.msra.mxu0 0
    %580 = vmatprep.subr.bf16.mxu0 0
    %581 = vmatpush1.bf16.xpose.msra.mxu0 0
    %582 = vmatprep.subr.bf16.mxu0 0
    %583 = vmatpush1.bf16.xpose.msra.mxu0 %v571
    %584 = vmatprep.subr.bf16.mxu0 0
    %585 = vmatpush1.bf16.xpose.msra.mxu0 %v570
    %586 = vmatprep.subr.bf16.mxu0 0
    %587 = vmatpush1.bf16.xpose.msra.mxu0 %v569
    %588 = vmatprep.subr.bf16.mxu0 0
    %589 = vmatpush2.bf16.xpose.msra.mxu0 0
    %590 = vmatprep.subr.bf16.mxu0 0
    %591 = vmatpush2.bf16.xpose.msra.mxu0 0
    %592 = vmatprep.subr.bf16.mxu0 0
    %593 = vmatpush2.bf16.xpose.msra.mxu0 0
    %594 = vmatprep.subr.bf16.mxu0 0
    %595 = vmatpush2.bf16.xpose.msra.mxu0 0
    %596 = vmatprep.subr.bf16.mxu0 0
    %597 = vmatpush2.bf16.xpose.msra.mxu0 0
    %598 = vmatprep.subr.bf16.mxu0 0
    %599 = vmatpush2.bf16.xpose.msra.mxu0 0
    %600 = vmatprep.subr.bf16.mxu0 0
    %601 = vmatpush2.bf16.xpose.msra.mxu0 0
    %602 = vmatprep.subr.bf16.mxu0 0
    %603 = vmatpush2.bf16.xpose.msra.mxu0 0
    %604 = vmatprep.mubr.bf16.mxu0 0
    %605 = vmatmul.mubr.bf16.gmra.mxu0 %v566
    %v606 = vpop.f32.mrf.mxu0
    %v607 = vadd.f32 0.0, %v606
    %v608 = vpop.f32.mrf.mxu0
    %v609 = vpop.f32.mrf.mxu0
    %v610 = vadd.f32 0.0, %v609
    %v611 = vpop.f32.mrf.mxu0
    %612 = vmatprep.mubr.bf16.mxu0 0
    %613 = vmatmul.mubr.bf16.gmra.mxu0 %v567
    %v614 = vpop.f32.mrf.mxu0
    %v615 = vadd.f32 0.0, %v614
    %v616 = vpop.f32.mrf.mxu0
    %v617 = vpop.f32.mrf.mxu0
    %v618 = vadd.f32 0.0, %v617
    %v619 = vpop.f32.mrf.mxu0
    %620 = vmatprep.mubr.bf16.mxu0 0
    %621 = vmatmul.mubr.bf16.gmra.mxu0 %v568
    %v622 = vpop.f32.mrf.mxu0
    %v623 = vadd.f32 0.0, %v622
    %v624 = vpop.f32.mrf.mxu0
    %v625 = vpop.f32.mrf.mxu0
    %v626 = vpop.f32.mrf.mxu0
    %627 = vdwg.mxu0
    %v628 = vmul.f32 %v607, 0.088388346
    %v629 = vmul.f32 %v610, 0.088388346
    %v630 = vmul.f32 %v615, 0.088388346
    %v631 = vmul.f32 %v618, 0.088388346
    %v632 = vmul.f32 %v623, 0.088388346
    %v633 = vlaneseq
    %v634 = vshrl.u32 %v633, 7
    %v635 = vadd.s32 %v634, 8
    %v636 = vadd.s32 %v634, 16
    %v637 = vadd.s32 %v634, 24
    %v638 = vadd.s32 %v634, 32
    %v639 = vlaneseq
    %v640 = vand.u32 %v639, 127
    %vm641 = vcmp.ge.s32.totalorder %v634, 16
    %vm642 = vcmp.ge.s32.totalorder %v635, 16
    %vm643 = vcmp.ge.s32.totalorder %v636, 16
    %vm644 = vcmp.ge.s32.totalorder %v637, 16
    %vm645 = vcmp.ge.s32.totalorder %v638, 16
    %v646 = vsel %vm641, 1, 0
    %v647 = vsel %vm642, 1, 0
    %v648 = vsel %vm643, 1, 0
    %v649 = vsel %vm644, 1, 0
    %v650 = vsel %vm645, 1, 0
    %vm651 = vcmp.lt.s32.totalorder %v634, 32
    %vm652 = vcmp.lt.s32.totalorder %v635, 32
    %vm653 = vcmp.lt.s32.totalorder %v636, 32
    %vm654 = vcmp.lt.s32.totalorder %v637, 32
    %vm655 = vcmp.lt.s32.totalorder %v638, 32
    %v656 = vsub.s32 %v634, 32
    %v657 = vsub.s32 %v635, 32
    %v658 = vsub.s32 %v636, 32
    %v659 = vsub.s32 %v637, 32
    %v660 = vsel %vm651, %v646, %v656
    %v661 = vsel %vm652, %v647, %v657
    %v662 = vsel %vm653, %v648, %v658
    %v663 = vsel %vm654, %v649, %v659
    %v664 = vsel %vm655, %v650, %v634
    %vm665 = vcmp.ge.s32.totalorder %v640, 16
    %v666 = vsel %vm665, 1, 0
    %vm667 = vcmp.lt.s32.totalorder %v640, 32
    %v668 = vsub.s32 %v640, 32
    %v669 = vsel %vm667, %v666, %v668
    %vm670 = vcmp.eq.s32.totalorder %v660, %v669
    %vm671 = vcmp.eq.s32.totalorder %v661, %v669
    %vm672 = vcmp.eq.s32.totalorder %v662, %v669
    %vm673 = vcmp.eq.s32.totalorder %v663, %v669
    %vm674 = vcmp.eq.s32.totalorder %v664, %v669
    %v675 = vsel %vm670, %v628, -1e+30
    %v676 = vsel %vm671, %v629, -1e+30
    %v677 = vsel %vm672, %v630, -1e+30
    %v678 = vsel %vm673, %v631, -1e+30
    %v679 = vsel %vm674, %v632, -1e+30
    %vm680 = vcmask 277504
    %v681 = vsel %vm680, %v675, -inf
    %682 = vmax.xlane.f32.xlu0 %v681
    %v683 = vpop.xlane.xlu0 %682
    %v684 = vsel %vm680, %v676, -inf
    %685 = vmax.xlane.f32.xlu0 %v684
    %v686 = vpop.xlane.xlu0 %685
    %v687 = vsel %vm680, %v677, -inf
    %688 = vmax.xlane.f32.xlu0 %v687
    %v689 = vpop.xlane.xlu0 %688
    %v690 = vsel %vm680, %v678, -inf
    %691 = vmax.xlane.f32.xlu0 %v690
    %v692 = vpop.xlane.xlu0 %691
    %vm693 = vcmask 271360
    %v694 = vsel %vm693, %v679, -inf
    %695 = vmax.xlane.f32.xlu0 %v694
    %v696 = vpop.xlane.xlu0 %695
    %v697 = vsub.f32 %v675, %v683
    %v698 = vsub.f32 %v676, %v686
    %v699 = vsub.f32 %v677, %v689
    %v700 = vsub.f32 %v678, %v692
    %v701 = vsub.f32 %v679, %v696
    %v702 = vmul.f32 %v697, 1.442695
    %v703 = vpow.pop %v702
    %v704 = vmul.f32 %v698, 1.442695
    %v705 = vpow.pop %v704
    %v706 = vmul.f32 %v699, 1.442695
    %v707 = vpow.pop %v706
    %v708 = vmul.f32 %v700, 1.442695
    %v709 = vpow.pop %v708
    %v710 = vmul.f32 %v701, 1.442695
    %v711 = vpow.pop %v710
    %v712 = vsel %vm680, %v703, 0.0
    %713 = vadd.xlane.f32.xlu0 %v712
    %v714 = vpop.xlane.xlu0 %713
    %v715 = vsel %vm680, %v705, 0.0
    %716 = vadd.xlane.f32.xlu0 %v715
    %v717 = vpop.xlane.xlu0 %716
    %v718 = vsel %vm680, %v707, 0.0
    %719 = vadd.xlane.f32.xlu0 %v718
    %v720 = vpop.xlane.xlu0 %719
    %v721 = vsel %vm680, %v709, 0.0
    %722 = vadd.xlane.f32.xlu0 %v721
    %v723 = vpop.xlane.xlu0 %722
    %v724 = vsel %vm693, %v711, 0.0
    %725 = vadd.xlane.f32.xlu0 %v724
    %v726 = vpop.xlane.xlu0 %725
    %v727 = vrcp.pop %v714
    %v728 = vrcp.pop %v717
    %v729 = vrcp.pop %v720
    %v730 = vrcp.pop %v723
    %v731 = vrcp.pop %v726
    %v732 = vmul.f32 %v703, %v727
    %v733 = vmul.f32 %v705, %v728
    %v734 = vmul.f32 %v707, %v729
    %v735 = vmul.f32 %v709, %v730
    %v736 = vmul.f32 %v711, %v731
    %v737 = vpack.c.bf16 %v733, %v732
    %v738 = vpack.c.bf16 %v735, %v734
    %v739 = vpack.c.bf16 %v736, %v736
    %v740 = vpack.c.bf16 %v562, %v561
    %v741 = vpack.c.bf16 %v564, %v563
    %v742 = vpack.c.bf16 %v565, %v565
    %v744 = vsel %vm680, %v737, 0
    %v747 = vsel %vm680, %v738, 0
    %v750 = vsel %vm680, %v739, 0
    %vm752 = vcmask 1040384
    %v754 = vsel %vm752, %v742, 0
    %756 = vmatprep.subr.bf16.mxu0 0
    %757 = vmatpush1.bf16.msra.mxu0 0
    %758 = vmatprep.subr.bf16.mxu0 0
    %759 = vmatpush1.bf16.msra.mxu0 0
    %760 = vmatprep.subr.bf16.mxu0 0
    %761 = vmatpush1.bf16.msra.mxu0 0
    %762 = vmatprep.subr.bf16.mxu0 0
    %763 = vmatpush1.bf16.msra.mxu0 0
    %764 = vmatprep.subr.bf16.mxu0 0
    %765 = vmatpush1.bf16.msra.mxu0 0
    %766 = vmatprep.subr.bf16.mxu0 0
    %767 = vmatpush1.bf16.msra.mxu0 %v754
    %768 = vmatprep.subr.bf16.mxu0 0
    %769 = vmatpush1.bf16.msra.mxu0 %v741
    %770 = vmatprep.subr.bf16.mxu0 0
    %771 = vmatpush1.bf16.msra.mxu0 %v740
    %772 = vmatprep.subr.bf16.mxu0 0
    %773 = vmatpush2.bf16.msra.mxu0 0
    %774 = vmatprep.subr.bf16.mxu0 0
    %775 = vmatpush2.bf16.msra.mxu0 0
    %776 = vmatprep.subr.bf16.mxu0 0
    %777 = vmatpush2.bf16.msra.mxu0 0
    %778 = vmatprep.subr.bf16.mxu0 0
    %779 = vmatpush2.bf16.msra.mxu0 0
    %780 = vmatprep.subr.bf16.mxu0 0
    %781 = vmatpush2.bf16.msra.mxu0 0
    %782 = vmatprep.subr.bf16.mxu0 0
    %783 = vmatpush2.bf16.msra.mxu0 0
    %784 = vmatprep.subr.bf16.mxu0 0
    %785 = vmatpush2.bf16.msra.mxu0 0
    %786 = vmatprep.subr.bf16.mxu0 0
    %787 = vmatpush2.bf16.msra.mxu0 0
    %788 = vmatprep.mubr.bf16.mxu0 0
    %789 = vmatmul.mubr.bf16.gmra.mxu0 %v744
    %v790 = vpop.f32.mrf.mxu0
    %v791 = vadd.f32 0.0, %v790
    %v792 = vpop.f32.mrf.mxu0
    %v793 = vpop.f32.mrf.mxu0
    %v794 = vadd.f32 0.0, %v793
    %v795 = vpop.f32.mrf.mxu0
    %796 = vmatprep.mubr.bf16.mxu0 0
    %797 = vmatmul.mubr.bf16.gmra.mxu0 %v747
    %v798 = vpop.f32.mrf.mxu0
    %v799 = vadd.f32 0.0, %v798
    %v800 = vpop.f32.mrf.mxu0
    %v801 = vpop.f32.mrf.mxu0
    %v802 = vadd.f32 0.0, %v801
    %v803 = vpop.f32.mrf.mxu0
    %804 = vmatprep.mubr.bf16.mxu0 0
    %805 = vmatmul.mubr.bf16.gmra.mxu0 %v750
    %v806 = vpop.f32.mrf.mxu0
    %v807 = vadd.f32 0.0, %v806
    %v808 = vpop.f32.mrf.mxu0
    %v809 = vpop.f32.mrf.mxu0
    %v810 = vpop.f32.mrf.mxu0
    %811 = vdwg.mxu0
    %v812 = vpack.c.bf16 %v794, %v791
    %v813 = vpack.c.bf16 %v802, %v799
    %v814 = vpack.c.bf16 %v807, %v807
    %v815 = vld [vmem:[%s4] sm:$0xf]
    %v816 = vld [vmem:[%s4 + $0x4] sm:$0xf]
    %v817 = vld [vmem:[%s4 + $0x8] sm:$0xf]
    %v818 = vld [vmem:[%s4 + $0xc] sm:$0xf]
    %v819 = vld [vmem:[%s4 + $0x10] sm:$0xf]
    %v820 = vld [vmem:[%s4 + $0x14] sm:$0xf]
    %v821 = vld [vmem:[%s4 + $0x18] sm:$0xf]
    %v822 = vld [vmem:[%s4 + $0x1c] sm:$0xf]
    %v823 = vld [vmem:[%s4 + $0x20] sm:$0xf]
    %v824 = vld [vmem:[%s4 + $0x24] sm:$0xf]
    %v825 = vld [vmem:[%s4 + $0x28] sm:$0xf]
    %v826 = vld [vmem:[%s4 + $0x2c] sm:$0xf]
    %v827 = vld [vmem:[%s4 + $0x30] sm:$0xf]
    %v828 = vld [vmem:[%s4 + $0x34] sm:$0xf]
    %v829 = vld [vmem:[%s4 + $0x38] sm:$0xf]
    %v830 = vld [vmem:[%s4 + $0x3c] sm:$0xf]
    %v847 = vunpack.c.l.b16 %v815
    %v848 = vunpack.c.l.b16 %v816
    %v849 = vunpack.c.l.b16 %v817
    %v850 = vunpack.c.l.b16 %v818
    %v851 = vunpack.c.l.b16 %v819
    %v852 = vunpack.c.l.b16 %v820
    %v853 = vunpack.c.l.b16 %v821
    %v854 = vunpack.c.l.b16 %v822
    %v855 = vunpack.c.l.b16 %v823
    %v856 = vunpack.c.l.b16 %v824
    %v857 = vunpack.c.l.b16 %v825
    %v858 = vunpack.c.l.b16 %v826
    %v859 = vunpack.c.l.b16 %v827
    %v860 = vunpack.c.l.b16 %v828
    %v861 = vunpack.c.l.b16 %v829
    %v862 = vunpack.c.l.b16 %v830
    %v863 = vpack.c.b16 %v848, %v847
    %v864 = vpack.c.b16 %v850, %v849
    %v865 = vpack.c.b16 %v852, %v851
    %v866 = vpack.c.b16 %v854, %v853
    %v867 = vpack.c.b16 %v856, %v855
    %v868 = vpack.c.b16 %v858, %v857
    %v869 = vpack.c.b16 %v860, %v859
    %v870 = vpack.c.b16 %v862, %v861
    %879 = vmatprep.subr.bf16.mxu0 0
    %880 = vmatpush1.bf16.msra.mxu0 %v870
    %881 = vmatprep.subr.bf16.mxu0 0
    %882 = vmatpush1.bf16.msra.mxu0 %v869
    %883 = vmatprep.subr.bf16.mxu0 0
    %884 = vmatpush1.bf16.msra.mxu0 %v868
    %885 = vmatprep.subr.bf16.mxu0 0
    %886 = vmatpush1.bf16.msra.mxu0 %v867
    %887 = vmatprep.subr.bf16.mxu0 0
    %888 = vmatpush1.bf16.msra.mxu0 %v866
    %889 = vmatprep.subr.bf16.mxu0 0
    %890 = vmatpush1.bf16.msra.mxu0 %v865
    %891 = vmatprep.subr.bf16.mxu0 0
    %892 = vmatpush1.bf16.msra.mxu0 %v864
    %893 = vmatprep.subr.bf16.mxu0 0
    %894 = vmatpush1.bf16.msra.mxu0 %v863
    %895 = vmatprep.subr.bf16.mxu0 0
    %896 = vmatpush2.bf16.msra.mxu0 0
    %897 = vmatprep.subr.bf16.mxu0 0
    %898 = vmatpush2.bf16.msra.mxu0 0
    %899 = vmatprep.subr.bf16.mxu0 0
    %900 = vmatpush2.bf16.msra.mxu0 0
    %901 = vmatprep.subr.bf16.mxu0 0
    %902 = vmatpush2.bf16.msra.mxu0 0
    %903 = vmatprep.subr.bf16.mxu0 0
    %904 = vmatpush2.bf16.msra.mxu0 0
    %905 = vmatprep.subr.bf16.mxu0 0
    %906 = vmatpush2.bf16.msra.mxu0 0
    %907 = vmatprep.subr.bf16.mxu0 0
    %908 = vmatpush2.bf16.msra.mxu0 0
    %909 = vmatprep.subr.bf16.mxu0 0
    %910 = vmatpush2.bf16.msra.mxu0 0
    %911 = vmatprep.mubr.bf16.mxu0 0
    %912 = vmatmul.mubr.bf16.gmra.mxu0 %v812
    %v913 = vpop.f32.mrf.mxu0
    %v914 = vadd.f32 0.0, %v913
    %v915 = vpop.f32.mrf.mxu0
    %v916 = vpop.f32.mrf.mxu0
    %v917 = vadd.f32 0.0, %v916
    %v918 = vpop.f32.mrf.mxu0
    %919 = vmatprep.mubr.bf16.mxu0 0
    %920 = vmatmul.mubr.bf16.gmra.mxu0 %v813
    %v921 = vpop.f32.mrf.mxu0
    %v922 = vadd.f32 0.0, %v921
    %v923 = vpop.f32.mrf.mxu0
    %v924 = vpop.f32.mrf.mxu0
    %v925 = vadd.f32 0.0, %v924
    %v926 = vpop.f32.mrf.mxu0
    %927 = vmatprep.mubr.bf16.mxu0 0
    %928 = vmatmul.mubr.bf16.gmra.mxu0 %v814
    %v929 = vpop.f32.mrf.mxu0
    %v930 = vadd.f32 0.0, %v929
    %v931 = vpop.f32.mrf.mxu0
    %v932 = vpop.f32.mrf.mxu0
    %v933 = vpop.f32.mrf.mxu0
    %934 = vdwg.mxu0
    %v935 = vadd.f32 %v161, %v914
    %v936 = vadd.f32 %v164, %v917
    %v937 = vadd.f32 %v169, %v922
    %v938 = vadd.f32 %v172, %v925
    %v939 = vadd.f32 %v177, %v930
    %v940 = vlaneseq
    %v941 = vshrl.u32 %v940, 7
    %v942 = vsub.s32 5, %v941
    %v943 = vrot.slane %v34, %v942
    %v944 = vadd.f32 %v935, %v943
    %v945 = vadd.f32 %v936, %v943
    %v946 = vadd.f32 %v937, %v943
    %v947 = vadd.f32 %v938, %v943
    %v948 = vadd.f32 %v939, %v943
    %949 = vadd.xlane.f32.xlu0 %v944
    %v950 = vpop.xlane.xlu0 %949
    %951 = vadd.xlane.f32.xlu0 %v945
    %v952 = vpop.xlane.xlu0 %951
    %953 = vadd.xlane.f32.xlu0 %v946
    %v954 = vpop.xlane.xlu0 %953
    %955 = vadd.xlane.f32.xlu0 %v947
    %v956 = vpop.xlane.xlu0 %955
    %v957 = vsel %vm190, %v948, 0.0
    %958 = vadd.xlane.f32.xlu0 %v957
    %v959 = vpop.xlane.xlu0 %958
    %v960 = vmul.f32 %v950, %v194
    %v961 = vmul.f32 %v952, %v194
    %v962 = vmul.f32 %v954, %v194
    %v963 = vmul.f32 %v956, %v194
    %v964 = vmul.f32 %v959, %v194
    %v965 = vsub.f32 %v944, %v960
    %v966 = vsub.f32 %v945, %v961
    %v967 = vsub.f32 %v946, %v962
    %v968 = vsub.f32 %v947, %v963
    %v969 = vsub.f32 %v948, %v964
    %v970 = vmul.f32 %v965, %v965
    %v971 = vmul.f32 %v966, %v966
    %v972 = vmul.f32 %v967, %v967
    %v973 = vmul.f32 %v968, %v968
    %v974 = vmul.f32 %v969, %v969
    %975 = vadd.xlane.f32.xlu0 %v970
    %v976 = vpop.xlane.xlu0 %975
    %977 = vadd.xlane.f32.xlu0 %v971
    %v978 = vpop.xlane.xlu0 %977
    %979 = vadd.xlane.f32.xlu0 %v972
    %v980 = vpop.xlane.xlu0 %979
    %981 = vadd.xlane.f32.xlu0 %v973
    %v982 = vpop.xlane.xlu0 %981
    %v983 = vsel %vm190, %v974, 0.0
    %984 = vadd.xlane.f32.xlu0 %v983
    %v985 = vpop.xlane.xlu0 %984
    %v986 = vmul.f32 %v976, %v194
    %v987 = vmul.f32 %v978, %v194
    %v988 = vmul.f32 %v980, %v194
    %v989 = vmul.f32 %v982, %v194
    %v990 = vmul.f32 %v985, %v194
    %v991 = vadd.f32 %v986, 1e-06
    %v992 = vadd.f32 %v987, 1e-06
    %v993 = vadd.f32 %v988, 1e-06
    %v994 = vadd.f32 %v989, 1e-06
    %v995 = vadd.f32 %v990, 1e-06
    %v996 = vrsqrt.pop %v991
    %v997 = vrsqrt.pop %v992
    %v998 = vrsqrt.pop %v993
    %v999 = vrsqrt.pop %v994
    %v1000 = vrsqrt.pop %v995
    %v1001 = vmul.f32 %v965, %v996
    %v1002 = vmul.f32 %v966, %v997
    %v1003 = vmul.f32 %v967, %v998
    %v1004 = vmul.f32 %v968, %v999
    %v1005 = vmul.f32 %v969, %v1000
    %v1006 = vlaneseq
    %v1007 = vshrl.u32 %v1006, 7
    %v1008 = vsub.s32 6, %v1007
    %v1009 = vrot.slane %v34, %v1008
    %v1010 = vmul.f32 %v1001, %v1009
    %v1011 = vmul.f32 %v1002, %v1009
    %v1012 = vmul.f32 %v1003, %v1009
    %v1013 = vmul.f32 %v1004, %v1009
    %v1014 = vmul.f32 %v1005, %v1009
    %v1015 = vlaneseq
    %v1016 = vshrl.u32 %v1015, 7
    %v1017 = vsub.s32 7, %v1016
    %v1018 = vrot.slane %v34, %v1017
    %v1019 = vadd.f32 %v1010, %v1018
    %v1020 = vadd.f32 %v1011, %v1018
    %v1021 = vadd.f32 %v1012, %v1018
    %v1022 = vadd.f32 %v1013, %v1018
    %v1023 = vadd.f32 %v1014, %v1018
    %v1024 = vpack.c.bf16 %v1020, %v1019
    %v1025 = vpack.c.bf16 %v1022, %v1021
    %v1026 = vpack.c.bf16 %v1023, %v1023
    %v1027 = vld [vmem:[%s5] sm:$0xff]
    %v1028 = vld [vmem:[%s5 + $0x8] sm:$0xff]
    %v1029 = vld [vmem:[%s5 + $0x10] sm:$0xff]
    %v1030 = vld [vmem:[%s5 + $0x18] sm:$0xff]
    %v1031 = vld [vmem:[%s5 + $0x20] sm:$0xff]
    %v1032 = vld [vmem:[%s5 + $0x28] sm:$0xff]
    %v1033 = vld [vmem:[%s5 + $0x30] sm:$0xff]
    %v1034 = vld [vmem:[%s5 + $0x38] sm:$0xff]
    %v1035 = vld [vmem:[%s5 + $0x40] sm:$0xff]
    %v1036 = vld [vmem:[%s5 + $0x48] sm:$0xff]
    %v1037 = vld [vmem:[%s5 + $0x50] sm:$0xff]
    %v1038 = vld [vmem:[%s5 + $0x58] sm:$0xff]
    %v1039 = vld [vmem:[%s5 + $0x60] sm:$0xff]
    %v1040 = vld [vmem:[%s5 + $0x68] sm:$0xff]
    %v1041 = vld [vmem:[%s5 + $0x70] sm:$0xff]
    %v1042 = vld [vmem:[%s5 + $0x78] sm:$0xff]
    %v1043 = vld [vmem:[%s5 + $0x80] sm:$0xff]
    %v1044 = vld [vmem:[%s5 + $0x88] sm:$0xff]
    %v1045 = vld [vmem:[%s5 + $0x90] sm:$0xff]
    %v1046 = vld [vmem:[%s5 + $0x98] sm:$0xff]
    %v1047 = vld [vmem:[%s5 + $0xa0] sm:$0xff]
    %v1048 = vld [vmem:[%s5 + $0xa8] sm:$0xff]
    %v1049 = vld [vmem:[%s5 + $0xb0] sm:$0xff]
    %v1050 = vld [vmem:[%s5 + $0xb8] sm:$0xff]
    %v1051 = vld [vmem:[%s5 + $0xc0] sm:$0xff]
    %v1052 = vld [vmem:[%s5 + $0xc8] sm:$0xff]
    %v1053 = vld [vmem:[%s5 + $0xd0] sm:$0xff]
    %v1054 = vld [vmem:[%s5 + $0xd8] sm:$0xff]
    %v1055 = vld [vmem:[%s5 + $0xe0] sm:$0xff]
    %v1056 = vld [vmem:[%s5 + $0xe8] sm:$0xff]
    %v1057 = vld [vmem:[%s5 + $0xf0] sm:$0xff]
    %v1058 = vld [vmem:[%s5 + $0xf8] sm:$0xff]
    %v1059 = vld [vmem:[%s6] sm:$0xf]
    %v1061 = vlaneseq
    %v1062 = vshrl.u32 %v1061, 7
    %v1063 = vsub.s32 0, %v1062
    %v1064 = vrot.slane %v1059, %v1063
    %v1065 = vlaneseq
    %v1066 = vshrl.u32 %v1065, 7
    %v1067 = vsub.s32 1, %v1066
    %v1068 = vrot.slane %v1059, %v1067
    %v1069 = vlaneseq
    %v1070 = vshrl.u32 %v1069, 7
    %v1071 = vsub.s32 2, %v1070
    %v1072 = vrot.slane %v1059, %v1071
    %v1073 = vlaneseq
    %v1074 = vshrl.u32 %v1073, 7
    %v1075 = vsub.s32 3, %v1074
    %v1076 = vrot.slane %v1059, %v1075
    %v1113 = vunpack.c.l.b16 %v1027
    %v1114 = vunpack.c.h.b16 %v1027
    %v1115 = vunpack.c.l.b16 %v1028
    %v1116 = vunpack.c.h.b16 %v1028
    %v1117 = vunpack.c.l.b16 %v1029
    %v1118 = vunpack.c.h.b16 %v1029
    %v1119 = vunpack.c.l.b16 %v1030
    %v1120 = vunpack.c.h.b16 %v1030
    %v1121 = vunpack.c.l.b16 %v1031
    %v1122 = vunpack.c.h.b16 %v1031
    %v1123 = vunpack.c.l.b16 %v1032
    %v1124 = vunpack.c.h.b16 %v1032
    %v1125 = vunpack.c.l.b16 %v1033
    %v1126 = vunpack.c.h.b16 %v1033
    %v1127 = vunpack.c.l.b16 %v1034
    %v1128 = vunpack.c.h.b16 %v1034
    %v1129 = vunpack.c.l.b16 %v1035
    %v1130 = vunpack.c.h.b16 %v1035
    %v1131 = vunpack.c.l.b16 %v1036
    %v1132 = vunpack.c.h.b16 %v1036
    %v1133 = vunpack.c.l.b16 %v1037
    %v1134 = vunpack.c.h.b16 %v1037
    %v1135 = vunpack.c.l.b16 %v1038
    %v1136 = vunpack.c.h.b16 %v1038
    %v1137 = vunpack.c.l.b16 %v1039
    %v1138 = vunpack.c.h.b16 %v1039
    %v1139 = vunpack.c.l.b16 %v1040
    %v1140 = vunpack.c.h.b16 %v1040
    %v1141 = vunpack.c.l.b16 %v1041
    %v1142 = vunpack.c.h.b16 %v1041
    %v1143 = vunpack.c.l.b16 %v1042
    %v1144 = vunpack.c.h.b16 %v1042
    %v1145 = vunpack.c.l.b16 %v1043
    %v1146 = vunpack.c.h.b16 %v1043
    %v1147 = vunpack.c.l.b16 %v1044
    %v1148 = vunpack.c.h.b16 %v1044
    %v1149 = vunpack.c.l.b16 %v1045
    %v1150 = vunpack.c.h.b16 %v1045
    %v1151 = vunpack.c.l.b16 %v1046
    %v1152 = vunpack.c.h.b16 %v1046
    %v1153 = vunpack.c.l.b16 %v1047
    %v1154 = vunpack.c.h.b16 %v1047
    %v1155 = vunpack.c.l.b16 %v1048
    %v1156 = vunpack.c.h.b16 %v1048
    %v1157 = vunpack.c.l.b16 %v1049
    %v1158 = vunpack.c.h.b16 %v1049
    %v1159 = vunpack.c.l.b16 %v1050
    %v1160 = vunpack.c.h.b16 %v1050
    %v1161 = vunpack.c.l.b16 %v1051
    %v1162 = vunpack.c.h.b16 %v1051
    %v1163 = vunpack.c.l.b16 %v1052
    %v1164 = vunpack.c.h.b16 %v1052
    %v1165 = vunpack.c.l.b16 %v1053
    %v1166 = vunpack.c.h.b16 %v1053
    %v1167 = vunpack.c.l.b16 %v1054
    %v1168 = vunpack.c.h.b16 %v1054
    %v1169 = vunpack.c.l.b16 %v1055
    %v1170 = vunpack.c.h.b16 %v1055
    %v1171 = vunpack.c.l.b16 %v1056
    %v1172 = vunpack.c.h.b16 %v1056
    %v1173 = vunpack.c.l.b16 %v1057
    %v1174 = vunpack.c.h.b16 %v1057
    %v1175 = vunpack.c.l.b16 %v1058
    %v1176 = vunpack.c.h.b16 %v1058
    %v1177 = vpack.c.b16 %v1117, %v1113
    %v1178 = vpack.c.b16 %v1118, %v1114
    %v1179 = vpack.c.b16 %v1119, %v1115
    %v1180 = vpack.c.b16 %v1120, %v1116
    %v1181 = vpack.c.b16 %v1125, %v1121
    %v1182 = vpack.c.b16 %v1126, %v1122
    %v1183 = vpack.c.b16 %v1127, %v1123
    %v1184 = vpack.c.b16 %v1128, %v1124
    %v1185 = vpack.c.b16 %v1133, %v1129
    %v1186 = vpack.c.b16 %v1134, %v1130
    %v1187 = vpack.c.b16 %v1135, %v1131
    %v1188 = vpack.c.b16 %v1136, %v1132
    %v1189 = vpack.c.b16 %v1141, %v1137
    %v1190 = vpack.c.b16 %v1142, %v1138
    %v1191 = vpack.c.b16 %v1143, %v1139
    %v1192 = vpack.c.b16 %v1144, %v1140
    %v1193 = vpack.c.b16 %v1149, %v1145
    %v1194 = vpack.c.b16 %v1150, %v1146
    %v1195 = vpack.c.b16 %v1151, %v1147
    %v1196 = vpack.c.b16 %v1152, %v1148
    %v1197 = vpack.c.b16 %v1157, %v1153
    %v1198 = vpack.c.b16 %v1158, %v1154
    %v1199 = vpack.c.b16 %v1159, %v1155
    %v1200 = vpack.c.b16 %v1160, %v1156
    %v1201 = vpack.c.b16 %v1165, %v1161
    %v1202 = vpack.c.b16 %v1166, %v1162
    %v1203 = vpack.c.b16 %v1167, %v1163
    %v1204 = vpack.c.b16 %v1168, %v1164
    %v1205 = vpack.c.b16 %v1173, %v1169
    %v1206 = vpack.c.b16 %v1174, %v1170
    %v1207 = vpack.c.b16 %v1175, %v1171
    %v1208 = vpack.c.b16 %v1176, %v1172
    %1241 = vmatprep.subr.bf16.mxu0 %v1206
    %1242 = vmatpush1.bf16.msra.mxu0 %v1205
    %1243 = vmatprep.subr.bf16.mxu0 %v1202
    %1244 = vmatpush1.bf16.msra.mxu0 %v1201
    %1245 = vmatprep.subr.bf16.mxu0 %v1198
    %1246 = vmatpush1.bf16.msra.mxu0 %v1197
    %1247 = vmatprep.subr.bf16.mxu0 %v1194
    %1248 = vmatpush1.bf16.msra.mxu0 %v1193
    %1249 = vmatprep.subr.bf16.mxu0 %v1190
    %1250 = vmatpush1.bf16.msra.mxu0 %v1189
    %1251 = vmatprep.subr.bf16.mxu0 %v1186
    %1252 = vmatpush1.bf16.msra.mxu0 %v1185
    %1253 = vmatprep.subr.bf16.mxu0 %v1182
    %1254 = vmatpush1.bf16.msra.mxu0 %v1181
    %1255 = vmatprep.subr.bf16.mxu0 %v1178
    %1256 = vmatpush1.bf16.msra.mxu0 %v1177
    %1257 = vmatprep.subr.bf16.mxu0 0
    %1258 = vmatpush2.bf16.msra.mxu0 0
    %1259 = vmatprep.subr.bf16.mxu0 0
    %1260 = vmatpush2.bf16.msra.mxu0 0
    %1261 = vmatprep.subr.bf16.mxu0 0
    %1262 = vmatpush2.bf16.msra.mxu0 0
    %1263 = vmatprep.subr.bf16.mxu0 0
    %1264 = vmatpush2.bf16.msra.mxu0 0
    %1265 = vmatprep.subr.bf16.mxu0 0
    %1266 = vmatpush2.bf16.msra.mxu0 0
    %1267 = vmatprep.subr.bf16.mxu0 0
    %1268 = vmatpush2.bf16.msra.mxu0 0
    %1269 = vmatprep.subr.bf16.mxu0 0
    %1270 = vmatpush2.bf16.msra.mxu0 0
    %1271 = vmatprep.subr.bf16.mxu0 0
    %1272 = vmatpush2.bf16.msra.mxu0 0
    %1273 = vmatprep.mubr.bf16.mxu0 0
    %1274 = vmatmul.mubr.bf16.gmra.mxu0 %v1024
    %v1275 = vpop.f32.mrf.mxu0
    %v1276 = vadd.f32 %v1064, %v1275
    %v1277 = vpop.f32.mrf.mxu0
    %v1278 = vadd.f32 %v1068, %v1277
    %v1279 = vpop.f32.mrf.mxu0
    %v1280 = vadd.f32 %v1064, %v1279
    %v1281 = vpop.f32.mrf.mxu0
    %v1282 = vadd.f32 %v1068, %v1281
    %1283 = vmatprep.mubr.bf16.mxu0 0
    %1284 = vmatmul.mubr.bf16.gmra.mxu0 %v1025
    %v1285 = vpop.f32.mrf.mxu0
    %v1286 = vadd.f32 %v1064, %v1285
    %v1287 = vpop.f32.mrf.mxu0
    %v1288 = vadd.f32 %v1068, %v1287
    %v1289 = vpop.f32.mrf.mxu0
    %v1290 = vadd.f32 %v1064, %v1289
    %v1291 = vpop.f32.mrf.mxu0
    %v1292 = vadd.f32 %v1068, %v1291
    %1293 = vmatprep.mubr.bf16.mxu0 0
    %1294 = vmatmul.mubr.bf16.gmra.mxu0 %v1026
    %v1295 = vpop.f32.mrf.mxu0
    %v1296 = vadd.f32 %v1064, %v1295
    %v1297 = vpop.f32.mrf.mxu0
    %v1298 = vadd.f32 %v1068, %v1297
    %v1299 = vpop.f32.mrf.mxu0
    %v1300 = vpop.f32.mrf.mxu0
    %1301 = vdwg.mxu0
    %1302 = vmatprep.subr.bf16.mxu0 %v1208
    %1303 = vmatpush1.bf16.msra.mxu0 %v1207
    %1304 = vmatprep.subr.bf16.mxu0 %v1204
    %1305 = vmatpush1.bf16.msra.mxu0 %v1203
    %1306 = vmatprep.subr.bf16.mxu0 %v1200
    %1307 = vmatpush1.bf16.msra.mxu0 %v1199
    %1308 = vmatprep.subr.bf16.mxu0 %v1196
    %1309 = vmatpush1.bf16.msra.mxu0 %v1195
    %1310 = vmatprep.subr.bf16.mxu0 %v1192
    %1311 = vmatpush1.bf16.msra.mxu0 %v1191
    %1312 = vmatprep.subr.bf16.mxu0 %v1188
    %1313 = vmatpush1.bf16.msra.mxu0 %v1187
    %1314 = vmatprep.subr.bf16.mxu0 %v1184
    %1315 = vmatpush1.bf16.msra.mxu0 %v1183
    %1316 = vmatprep.subr.bf16.mxu0 %v1180
    %1317 = vmatpush1.bf16.msra.mxu0 %v1179
    %1318 = vmatprep.subr.bf16.mxu0 0
    %1319 = vmatpush2.bf16.msra.mxu0 0
    %1320 = vmatprep.subr.bf16.mxu0 0
    %1321 = vmatpush2.bf16.msra.mxu0 0
    %1322 = vmatprep.subr.bf16.mxu0 0
    %1323 = vmatpush2.bf16.msra.mxu0 0
    %1324 = vmatprep.subr.bf16.mxu0 0
    %1325 = vmatpush2.bf16.msra.mxu0 0
    %1326 = vmatprep.subr.bf16.mxu0 0
    %1327 = vmatpush2.bf16.msra.mxu0 0
    %1328 = vmatprep.subr.bf16.mxu0 0
    %1329 = vmatpush2.bf16.msra.mxu0 0
    %1330 = vmatprep.subr.bf16.mxu0 0
    %1331 = vmatpush2.bf16.msra.mxu0 0
    %1332 = vmatprep.subr.bf16.mxu0 0
    %1333 = vmatpush2.bf16.msra.mxu0 0
    %1334 = vmatprep.mubr.bf16.mxu0 0
    %1335 = vmatmul.mubr.bf16.gmra.mxu0 %v1024
    %v1336 = vpop.f32.mrf.mxu0
    %v1337 = vadd.f32 %v1072, %v1336
    %v1338 = vpop.f32.mrf.mxu0
    %v1339 = vadd.f32 %v1076, %v1338
    %v1340 = vpop.f32.mrf.mxu0
    %v1341 = vadd.f32 %v1072, %v1340
    %v1342 = vpop.f32.mrf.mxu0
    %v1343 = vadd.f32 %v1076, %v1342
    %1344 = vmatprep.mubr.bf16.mxu0 0
    %1345 = vmatmul.mubr.bf16.gmra.mxu0 %v1025
    %v1346 = vpop.f32.mrf.mxu0
    %v1347 = vadd.f32 %v1072, %v1346
    %v1348 = vpop.f32.mrf.mxu0
    %v1349 = vadd.f32 %v1076, %v1348
    %v1350 = vpop.f32.mrf.mxu0
    %v1351 = vadd.f32 %v1072, %v1350
    %v1352 = vpop.f32.mrf.mxu0
    %v1353 = vadd.f32 %v1076, %v1352
    %1354 = vmatprep.mubr.bf16.mxu0 0
    %1355 = vmatmul.mubr.bf16.gmra.mxu0 %v1026
    %v1356 = vpop.f32.mrf.mxu0
    %v1357 = vadd.f32 %v1072, %v1356
    %v1358 = vpop.f32.mrf.mxu0
    %v1359 = vadd.f32 %v1076, %v1358
    %v1360 = vpop.f32.mrf.mxu0
    %v1361 = vpop.f32.mrf.mxu0
    %1362 = vdwg.mxu0
    %v1363 = vmul.f32 %v1276, 0.5
    %v1364 = vmul.f32 %v1278, 0.5
    %v1365 = vmul.f32 %v1337, 0.5
    %v1366 = vmul.f32 %v1339, 0.5
    %v1367 = vmul.f32 %v1280, 0.5
    %v1368 = vmul.f32 %v1282, 0.5
    %v1369 = vmul.f32 %v1341, 0.5
    %v1370 = vmul.f32 %v1343, 0.5
    %v1371 = vmul.f32 %v1286, 0.5
    %v1372 = vmul.f32 %v1288, 0.5
    %v1373 = vmul.f32 %v1347, 0.5
    %v1374 = vmul.f32 %v1349, 0.5
    %v1375 = vmul.f32 %v1290, 0.5
    %v1376 = vmul.f32 %v1292, 0.5
    %v1377 = vmul.f32 %v1351, 0.5
    %v1378 = vmul.f32 %v1353, 0.5
    %v1379 = vmul.f32 %v1296, 0.5
    %v1380 = vmul.f32 %v1298, 0.5
    %v1381 = vmul.f32 %v1357, 0.5
    %v1382 = vmul.f32 %v1359, 0.5
    %v1383 = vmul.f32 %v1276, 0.70710677
    %v1384 = vmul.f32 %v1278, 0.70710677
    %v1385 = vmul.f32 %v1337, 0.70710677
    %v1386 = vmul.f32 %v1339, 0.70710677
    %v1387 = vmul.f32 %v1280, 0.70710677
    %v1388 = vmul.f32 %v1282, 0.70710677
    %v1389 = vmul.f32 %v1341, 0.70710677
    %v1390 = vmul.f32 %v1343, 0.70710677
    %v1391 = vmul.f32 %v1286, 0.70710677
    %v1392 = vmul.f32 %v1288, 0.70710677
    %v1393 = vmul.f32 %v1347, 0.70710677
    %v1394 = vmul.f32 %v1349, 0.70710677
    %v1395 = vmul.f32 %v1290, 0.70710677
    %v1396 = vmul.f32 %v1292, 0.70710677
    %v1397 = vmul.f32 %v1351, 0.70710677
    %v1398 = vmul.f32 %v1353, 0.70710677
    %v1399 = vmul.f32 %v1296, 0.70710677
    %v1400 = vmul.f32 %v1298, 0.70710677
    %v1401 = vmul.f32 %v1357, 0.70710677
    %v1402 = vmul.f32 %v1359, 0.70710677
    %vm1403 = vcmp.ge.f32.partialorder %v1383, 0.0
    %vm1404 = vcmp.ge.f32.partialorder %v1384, 0.0
    %vm1405 = vcmp.ge.f32.partialorder %v1385, 0.0
    %vm1406 = vcmp.ge.f32.partialorder %v1386, 0.0
    %vm1407 = vcmp.ge.f32.partialorder %v1387, 0.0
    %vm1408 = vcmp.ge.f32.partialorder %v1388, 0.0
    %vm1409 = vcmp.ge.f32.partialorder %v1389, 0.0
    %vm1410 = vcmp.ge.f32.partialorder %v1390, 0.0
    %vm1411 = vcmp.ge.f32.partialorder %v1391, 0.0
    %vm1412 = vcmp.ge.f32.partialorder %v1392, 0.0
    %vm1413 = vcmp.ge.f32.partialorder %v1393, 0.0
    %vm1414 = vcmp.ge.f32.partialorder %v1394, 0.0
    %vm1415 = vcmp.ge.f32.partialorder %v1395, 0.0
    %vm1416 = vcmp.ge.f32.partialorder %v1396, 0.0
    %vm1417 = vcmp.ge.f32.partialorder %v1397, 0.0
    %vm1418 = vcmp.ge.f32.partialorder %v1398, 0.0
    %vm1419 = vcmp.ge.f32.partialorder %v1399, 0.0
    %vm1420 = vcmp.ge.f32.partialorder %v1400, 0.0
    %vm1421 = vcmp.ge.f32.partialorder %v1401, 0.0
    %vm1422 = vcmp.ge.f32.partialorder %v1402, 0.0
    %v1423 = vsel %vm1403, 1.0, -1.0
    %v1424 = vsel %vm1404, 1.0, -1.0
    %v1425 = vsel %vm1405, 1.0, -1.0
    %v1426 = vsel %vm1406, 1.0, -1.0
    %v1427 = vsel %vm1407, 1.0, -1.0
    %v1428 = vsel %vm1408, 1.0, -1.0
    %v1429 = vsel %vm1409, 1.0, -1.0
    %v1430 = vsel %vm1410, 1.0, -1.0
    %v1431 = vsel %vm1411, 1.0, -1.0
    %v1432 = vsel %vm1412, 1.0, -1.0
    %v1433 = vsel %vm1413, 1.0, -1.0
    %v1434 = vsel %vm1414, 1.0, -1.0
    %v1435 = vsel %vm1415, 1.0, -1.0
    %v1436 = vsel %vm1416, 1.0, -1.0
    %v1437 = vsel %vm1417, 1.0, -1.0
    %v1438 = vsel %vm1418, 1.0, -1.0
    %v1439 = vsel %vm1419, 1.0, -1.0
    %v1440 = vsel %vm1420, 1.0, -1.0
    %v1441 = vsel %vm1421, 1.0, -1.0
    %v1442 = vsel %vm1422, 1.0, -1.0
    %v1443 = vand.u32 2147483647, %v1383
    %v1444 = vand.u32 2147483647, %v1384
    %v1445 = vand.u32 2147483647, %v1385
    %v1446 = vand.u32 2147483647, %v1386
    %v1447 = vand.u32 2147483647, %v1387
    %v1448 = vand.u32 2147483647, %v1388
    %v1449 = vand.u32 2147483647, %v1389
    %v1450 = vand.u32 2147483647, %v1390
    %v1451 = vand.u32 2147483647, %v1391
    %v1452 = vand.u32 2147483647, %v1392
    %v1453 = vand.u32 2147483647, %v1393
    %v1454 = vand.u32 2147483647, %v1394
    %v1455 = vand.u32 2147483647, %v1395
    %v1456 = vand.u32 2147483647, %v1396
    %v1457 = vand.u32 2147483647, %v1397
    %v1458 = vand.u32 2147483647, %v1398
    %v1459 = vand.u32 2147483647, %v1399
    %v1460 = vand.u32 2147483647, %v1400
    %v1461 = vand.u32 2147483647, %v1401
    %v1462 = vand.u32 2147483647, %v1402
    %v1463 = vmul.f32 %v1443, 0.3275911
    %v1464 = vmul.f32 %v1444, 0.3275911
    %v1465 = vmul.f32 %v1445, 0.3275911
    %v1466 = vmul.f32 %v1446, 0.3275911
    %v1467 = vmul.f32 %v1447, 0.3275911
    %v1468 = vmul.f32 %v1448, 0.3275911
    %v1469 = vmul.f32 %v1449, 0.3275911
    %v1470 = vmul.f32 %v1450, 0.3275911
    %v1471 = vmul.f32 %v1451, 0.3275911
    %v1472 = vmul.f32 %v1452, 0.3275911
    %v1473 = vmul.f32 %v1453, 0.3275911
    %v1474 = vmul.f32 %v1454, 0.3275911
    %v1475 = vmul.f32 %v1455, 0.3275911
    %v1476 = vmul.f32 %v1456, 0.3275911
    %v1477 = vmul.f32 %v1457, 0.3275911
    %v1478 = vmul.f32 %v1458, 0.3275911
    %v1479 = vmul.f32 %v1459, 0.3275911
    %v1480 = vmul.f32 %v1460, 0.3275911
    %v1481 = vmul.f32 %v1461, 0.3275911
    %v1482 = vmul.f32 %v1462, 0.3275911
    %v1483 = vadd.f32 %v1463, 1.0
    %v1484 = vadd.f32 %v1464, 1.0
    %v1485 = vadd.f32 %v1465, 1.0
    %v1486 = vadd.f32 %v1466, 1.0
    %v1487 = vadd.f32 %v1467, 1.0
    %v1488 = vadd.f32 %v1468, 1.0
    %v1489 = vadd.f32 %v1469, 1.0
    %v1490 = vadd.f32 %v1470, 1.0
    %v1491 = vadd.f32 %v1471, 1.0
    %v1492 = vadd.f32 %v1472, 1.0
    %v1493 = vadd.f32 %v1473, 1.0
    %v1494 = vadd.f32 %v1474, 1.0
    %v1495 = vadd.f32 %v1475, 1.0
    %v1496 = vadd.f32 %v1476, 1.0
    %v1497 = vadd.f32 %v1477, 1.0
    %v1498 = vadd.f32 %v1478, 1.0
    %v1499 = vadd.f32 %v1479, 1.0
    %v1500 = vadd.f32 %v1480, 1.0
    %v1501 = vadd.f32 %v1481, 1.0
    %v1502 = vadd.f32 %v1482, 1.0
    %v1503 = vrcp.pop %v1483
    %v1504 = vrcp.pop %v1484
    %v1505 = vrcp.pop %v1485
    %v1506 = vrcp.pop %v1486
    %v1507 = vrcp.pop %v1487
    %v1508 = vrcp.pop %v1488
    %v1509 = vrcp.pop %v1489
    %v1510 = vrcp.pop %v1490
    %v1511 = vrcp.pop %v1491
    %v1512 = vrcp.pop %v1492
    %v1513 = vrcp.pop %v1493
    %v1514 = vrcp.pop %v1494
    %v1515 = vrcp.pop %v1495
    %v1516 = vrcp.pop %v1496
    %v1517 = vrcp.pop %v1497
    %v1518 = vrcp.pop %v1498
    %v1519 = vrcp.pop %v1499
    %v1520 = vrcp.pop %v1500
    %v1521 = vrcp.pop %v1501
    %v1522 = vrcp.pop %v1502
    %v1523 = vmul.f32 %v1503, 1.0614054
    %v1524 = vmul.f32 %v1504, 1.0614054
    %v1525 = vmul.f32 %v1505, 1.0614054
    %v1526 = vmul.f32 %v1506, 1.0614054
    %v1527 = vmul.f32 %v1507, 1.0614054
    %v1528 = vmul.f32 %v1508, 1.0614054
    %v1529 = vmul.f32 %v1509, 1.0614054
    %v1530 = vmul.f32 %v1510, 1.0614054
    %v1531 = vmul.f32 %v1511, 1.0614054
    %v1532 = vmul.f32 %v1512, 1.0614054
    %v1533 = vmul.f32 %v1513, 1.0614054
    %v1534 = vmul.f32 %v1514, 1.0614054
    %v1535 = vmul.f32 %v1515, 1.0614054
    %v1536 = vmul.f32 %v1516, 1.0614054
    %v1537 = vmul.f32 %v1517, 1.0614054
    %v1538 = vmul.f32 %v1518, 1.0614054
    %v1539 = vmul.f32 %v1519, 1.0614054
    %v1540 = vmul.f32 %v1520, 1.0614054
    %v1541 = vmul.f32 %v1521, 1.0614054
    %v1542 = vmul.f32 %v1522, 1.0614054
    %v1543 = vadd.f32 %v1523, -1.4531521
    %v1544 = vadd.f32 %v1524, -1.4531521
    %v1545 = vadd.f32 %v1525, -1.4531521
    %v1546 = vadd.f32 %v1526, -1.4531521
    %v1547 = vadd.f32 %v1527, -1.4531521
    %v1548 = vadd.f32 %v1528, -1.4531521
    %v1549 = vadd.f32 %v1529, -1.4531521
    %v1550 = vadd.f32 %v1530, -1.4531521
    %v1551 = vadd.f32 %v1531, -1.4531521
    %v1552 = vadd.f32 %v1532, -1.4531521
    %v1553 = vadd.f32 %v1533, -1.4531521
    %v1554 = vadd.f32 %v1534, -1.4531521
    %v1555 = vadd.f32 %v1535, -1.4531521
    %v1556 = vadd.f32 %v1536, -1.4531521
    %v1557 = vadd.f32 %v1537, -1.4531521
    %v1558 = vadd.f32 %v1538, -1.4531521
    %v1559 = vadd.f32 %v1539, -1.4531521
    %v1560 = vadd.f32 %v1540, -1.4531521
    %v1561 = vadd.f32 %v1541, -1.4531521
    %v1562 = vadd.f32 %v1542, -1.4531521
    %v1563 = vmul.f32 %v1543, %v1503
    %v1564 = vmul.f32 %v1544, %v1504
    %v1565 = vmul.f32 %v1545, %v1505
    %v1566 = vmul.f32 %v1546, %v1506
    %v1567 = vmul.f32 %v1547, %v1507
    %v1568 = vmul.f32 %v1548, %v1508
    %v1569 = vmul.f32 %v1549, %v1509
    %v1570 = vmul.f32 %v1550, %v1510
    %v1571 = vmul.f32 %v1551, %v1511
    %v1572 = vmul.f32 %v1552, %v1512
    %v1573 = vmul.f32 %v1553, %v1513
    %v1574 = vmul.f32 %v1554, %v1514
    %v1575 = vmul.f32 %v1555, %v1515
    %v1576 = vmul.f32 %v1556, %v1516
    %v1577 = vmul.f32 %v1557, %v1517
    %v1578 = vmul.f32 %v1558, %v1518
    %v1579 = vmul.f32 %v1559, %v1519
    %v1580 = vmul.f32 %v1560, %v1520
    %v1581 = vmul.f32 %v1561, %v1521
    %v1582 = vmul.f32 %v1562, %v1522
    %v1583 = vadd.f32 %v1563, 1.4214138
    %v1584 = vadd.f32 %v1564, 1.4214138
    %v1585 = vadd.f32 %v1565, 1.4214138
    %v1586 = vadd.f32 %v1566, 1.4214138
    %v1587 = vadd.f32 %v1567, 1.4214138
    %v1588 = vadd.f32 %v1568, 1.4214138
    %v1589 = vadd.f32 %v1569, 1.4214138
    %v1590 = vadd.f32 %v1570, 1.4214138
    %v1591 = vadd.f32 %v1571, 1.4214138
    %v1592 = vadd.f32 %v1572, 1.4214138
    %v1593 = vadd.f32 %v1573, 1.4214138
    %v1594 = vadd.f32 %v1574, 1.4214138
    %v1595 = vadd.f32 %v1575, 1.4214138
    %v1596 = vadd.f32 %v1576, 1.4214138
    %v1597 = vadd.f32 %v1577, 1.4214138
    %v1598 = vadd.f32 %v1578, 1.4214138
    %v1599 = vadd.f32 %v1579, 1.4214138
    %v1600 = vadd.f32 %v1580, 1.4214138
    %v1601 = vadd.f32 %v1581, 1.4214138
    %v1602 = vadd.f32 %v1582, 1.4214138
    %v1603 = vmul.f32 %v1583, %v1503
    %v1604 = vmul.f32 %v1584, %v1504
    %v1605 = vmul.f32 %v1585, %v1505
    %v1606 = vmul.f32 %v1586, %v1506
    %v1607 = vmul.f32 %v1587, %v1507
    %v1608 = vmul.f32 %v1588, %v1508
    %v1609 = vmul.f32 %v1589, %v1509
    %v1610 = vmul.f32 %v1590, %v1510
    %v1611 = vmul.f32 %v1591, %v1511
    %v1612 = vmul.f32 %v1592, %v1512
    %v1613 = vmul.f32 %v1593, %v1513
    %v1614 = vmul.f32 %v1594, %v1514
    %v1615 = vmul.f32 %v1595, %v1515
    %v1616 = vmul.f32 %v1596, %v1516
    %v1617 = vmul.f32 %v1597, %v1517
    %v1618 = vmul.f32 %v1598, %v1518
    %v1619 = vmul.f32 %v1599, %v1519
    %v1620 = vmul.f32 %v1600, %v1520
    %v1621 = vmul.f32 %v1601, %v1521
    %v1622 = vmul.f32 %v1602, %v1522
    %v1623 = vadd.f32 %v1603, -0.28449672
    %v1624 = vadd.f32 %v1604, -0.28449672
    %v1625 = vadd.f32 %v1605, -0.28449672
    %v1626 = vadd.f32 %v1606, -0.28449672
    %v1627 = vadd.f32 %v1607, -0.28449672
    %v1628 = vadd.f32 %v1608, -0.28449672
    %v1629 = vadd.f32 %v1609, -0.28449672
    %v1630 = vadd.f32 %v1610, -0.28449672
    %v1631 = vadd.f32 %v1611, -0.28449672
    %v1632 = vadd.f32 %v1612, -0.28449672
    %v1633 = vadd.f32 %v1613, -0.28449672
    %v1634 = vadd.f32 %v1614, -0.28449672
    %v1635 = vadd.f32 %v1615, -0.28449672
    %v1636 = vadd.f32 %v1616, -0.28449672
    %v1637 = vadd.f32 %v1617, -0.28449672
    %v1638 = vadd.f32 %v1618, -0.28449672
    %v1639 = vadd.f32 %v1619, -0.28449672
    %v1640 = vadd.f32 %v1620, -0.28449672
    %v1641 = vadd.f32 %v1621, -0.28449672
    %v1642 = vadd.f32 %v1622, -0.28449672
    %v1643 = vmul.f32 %v1623, %v1503
    %v1644 = vmul.f32 %v1624, %v1504
    %v1645 = vmul.f32 %v1625, %v1505
    %v1646 = vmul.f32 %v1626, %v1506
    %v1647 = vmul.f32 %v1627, %v1507
    %v1648 = vmul.f32 %v1628, %v1508
    %v1649 = vmul.f32 %v1629, %v1509
    %v1650 = vmul.f32 %v1630, %v1510
    %v1651 = vmul.f32 %v1631, %v1511
    %v1652 = vmul.f32 %v1632, %v1512
    %v1653 = vmul.f32 %v1633, %v1513
    %v1654 = vmul.f32 %v1634, %v1514
    %v1655 = vmul.f32 %v1635, %v1515
    %v1656 = vmul.f32 %v1636, %v1516
    %v1657 = vmul.f32 %v1637, %v1517
    %v1658 = vmul.f32 %v1638, %v1518
    %v1659 = vmul.f32 %v1639, %v1519
    %v1660 = vmul.f32 %v1640, %v1520
    %v1661 = vmul.f32 %v1641, %v1521
    %v1662 = vmul.f32 %v1642, %v1522
    %v1663 = vadd.f32 %v1643, 0.2548296
    %v1664 = vadd.f32 %v1644, 0.2548296
    %v1665 = vadd.f32 %v1645, 0.2548296
    %v1666 = vadd.f32 %v1646, 0.2548296
    %v1667 = vadd.f32 %v1647, 0.2548296
    %v1668 = vadd.f32 %v1648, 0.2548296
    %v1669 = vadd.f32 %v1649, 0.2548296
    %v1670 = vadd.f32 %v1650, 0.2548296
    %v1671 = vadd.f32 %v1651, 0.2548296
    %v1672 = vadd.f32 %v1652, 0.2548296
    %v1673 = vadd.f32 %v1653, 0.2548296
    %v1674 = vadd.f32 %v1654, 0.2548296
    %v1675 = vadd.f32 %v1655, 0.2548296
    %v1676 = vadd.f32 %v1656, 0.2548296
    %v1677 = vadd.f32 %v1657, 0.2548296
    %v1678 = vadd.f32 %v1658, 0.2548296
    %v1679 = vadd.f32 %v1659, 0.2548296
    %v1680 = vadd.f32 %v1660, 0.2548296
    %v1681 = vadd.f32 %v1661, 0.2548296
    %v1682 = vadd.f32 %v1662, 0.2548296
    %v1683 = vmul.f32 %v1663, %v1503
    %v1684 = vmul.f32 %v1664, %v1504
    %v1685 = vmul.f32 %v1665, %v1505
    %v1686 = vmul.f32 %v1666, %v1506
    %v1687 = vmul.f32 %v1667, %v1507
    %v1688 = vmul.f32 %v1668, %v1508
    %v1689 = vmul.f32 %v1669, %v1509
    %v1690 = vmul.f32 %v1670, %v1510
    %v1691 = vmul.f32 %v1671, %v1511
    %v1692 = vmul.f32 %v1672, %v1512
    %v1693 = vmul.f32 %v1673, %v1513
    %v1694 = vmul.f32 %v1674, %v1514
    %v1695 = vmul.f32 %v1675, %v1515
    %v1696 = vmul.f32 %v1676, %v1516
    %v1697 = vmul.f32 %v1677, %v1517
    %v1698 = vmul.f32 %v1678, %v1518
    %v1699 = vmul.f32 %v1679, %v1519
    %v1700 = vmul.f32 %v1680, %v1520
    %v1701 = vmul.f32 %v1681, %v1521
    %v1702 = vmul.f32 %v1682, %v1522
    %v1703 = vsub.f32 0.0, %v1443
    %v1704 = vsub.f32 0.0, %v1444
    %v1705 = vsub.f32 0.0, %v1445
    %v1706 = vsub.f32 0.0, %v1446
    %v1707 = vsub.f32 0.0, %v1447
    %v1708 = vsub.f32 0.0, %v1448
    %v1709 = vsub.f32 0.0, %v1449
    %v1710 = vsub.f32 0.0, %v1450
    %v1711 = vsub.f32 0.0, %v1451
    %v1712 = vsub.f32 0.0, %v1452
    %v1713 = vsub.f32 0.0, %v1453
    %v1714 = vsub.f32 0.0, %v1454
    %v1715 = vsub.f32 0.0, %v1455
    %v1716 = vsub.f32 0.0, %v1456
    %v1717 = vsub.f32 0.0, %v1457
    %v1718 = vsub.f32 0.0, %v1458
    %v1719 = vsub.f32 0.0, %v1459
    %v1720 = vsub.f32 0.0, %v1460
    %v1721 = vsub.f32 0.0, %v1461
    %v1722 = vsub.f32 0.0, %v1462
    %v1723 = vmul.f32 %v1703, %v1443
    %v1724 = vmul.f32 %v1704, %v1444
    %v1725 = vmul.f32 %v1705, %v1445
    %v1726 = vmul.f32 %v1706, %v1446
    %v1727 = vmul.f32 %v1707, %v1447
    %v1728 = vmul.f32 %v1708, %v1448
    %v1729 = vmul.f32 %v1709, %v1449
    %v1730 = vmul.f32 %v1710, %v1450
    %v1731 = vmul.f32 %v1711, %v1451
    %v1732 = vmul.f32 %v1712, %v1452
    %v1733 = vmul.f32 %v1713, %v1453
    %v1734 = vmul.f32 %v1714, %v1454
    %v1735 = vmul.f32 %v1715, %v1455
    %v1736 = vmul.f32 %v1716, %v1456
    %v1737 = vmul.f32 %v1717, %v1457
    %v1738 = vmul.f32 %v1718, %v1458
    %v1739 = vmul.f32 %v1719, %v1459
    %v1740 = vmul.f32 %v1720, %v1460
    %v1741 = vmul.f32 %v1721, %v1461
    %v1742 = vmul.f32 %v1722, %v1462
    %v1743 = vmul.f32 %v1723, 1.442695
    %v1744 = vpow.pop %v1743
    %v1745 = vmul.f32 %v1724, 1.442695
    %v1746 = vpow.pop %v1745
    %v1747 = vmul.f32 %v1725, 1.442695
    %v1748 = vpow.pop %v1747
    %v1749 = vmul.f32 %v1726, 1.442695
    %v1750 = vpow.pop %v1749
    %v1751 = vmul.f32 %v1727, 1.442695
    %v1752 = vpow.pop %v1751
    %v1753 = vmul.f32 %v1728, 1.442695
    %v1754 = vpow.pop %v1753
    %v1755 = vmul.f32 %v1729, 1.442695
    %v1756 = vpow.pop %v1755
    %v1757 = vmul.f32 %v1730, 1.442695
    %v1758 = vpow.pop %v1757
    %v1759 = vmul.f32 %v1731, 1.442695
    %v1760 = vpow.pop %v1759
    %v1761 = vmul.f32 %v1732, 1.442695
    %v1762 = vpow.pop %v1761
    %v1763 = vmul.f32 %v1733, 1.442695
    %v1764 = vpow.pop %v1763
    %v1765 = vmul.f32 %v1734, 1.442695
    %v1766 = vpow.pop %v1765
    %v1767 = vmul.f32 %v1735, 1.442695
    %v1768 = vpow.pop %v1767
    %v1769 = vmul.f32 %v1736, 1.442695
    %v1770 = vpow.pop %v1769
    %v1771 = vmul.f32 %v1737, 1.442695
    %v1772 = vpow.pop %v1771
    %v1773 = vmul.f32 %v1738, 1.442695
    %v1774 = vpow.pop %v1773
    %v1775 = vmul.f32 %v1739, 1.442695
    %v1776 = vpow.pop %v1775
    %v1777 = vmul.f32 %v1740, 1.442695
    %v1778 = vpow.pop %v1777
    %v1779 = vmul.f32 %v1741, 1.442695
    %v1780 = vpow.pop %v1779
    %v1781 = vmul.f32 %v1742, 1.442695
    %v1782 = vpow.pop %v1781
    %v1783 = vmul.f32 %v1683, %v1744
    %v1784 = vmul.f32 %v1684, %v1746
    %v1785 = vmul.f32 %v1685, %v1748
    %v1786 = vmul.f32 %v1686, %v1750
    %v1787 = vmul.f32 %v1687, %v1752
    %v1788 = vmul.f32 %v1688, %v1754
    %v1789 = vmul.f32 %v1689, %v1756
    %v1790 = vmul.f32 %v1690, %v1758
    %v1791 = vmul.f32 %v1691, %v1760
    %v1792 = vmul.f32 %v1692, %v1762
    %v1793 = vmul.f32 %v1693, %v1764
    %v1794 = vmul.f32 %v1694, %v1766
    %v1795 = vmul.f32 %v1695, %v1768
    %v1796 = vmul.f32 %v1696, %v1770
    %v1797 = vmul.f32 %v1697, %v1772
    %v1798 = vmul.f32 %v1698, %v1774
    %v1799 = vmul.f32 %v1699, %v1776
    %v1800 = vmul.f32 %v1700, %v1778
    %v1801 = vmul.f32 %v1701, %v1780
    %v1802 = vmul.f32 %v1702, %v1782
    %v1803 = vsub.f32 1.0, %v1783
    %v1804 = vsub.f32 1.0, %v1784
    %v1805 = vsub.f32 1.0, %v1785
    %v1806 = vsub.f32 1.0, %v1786
    %v1807 = vsub.f32 1.0, %v1787
    %v1808 = vsub.f32 1.0, %v1788
    %v1809 = vsub.f32 1.0, %v1789
    %v1810 = vsub.f32 1.0, %v1790
    %v1811 = vsub.f32 1.0, %v1791
    %v1812 = vsub.f32 1.0, %v1792
    %v1813 = vsub.f32 1.0, %v1793
    %v1814 = vsub.f32 1.0, %v1794
    %v1815 = vsub.f32 1.0, %v1795
    %v1816 = vsub.f32 1.0, %v1796
    %v1817 = vsub.f32 1.0, %v1797
    %v1818 = vsub.f32 1.0, %v1798
    %v1819 = vsub.f32 1.0, %v1799
    %v1820 = vsub.f32 1.0, %v1800
    %v1821 = vsub.f32 1.0, %v1801
    %v1822 = vsub.f32 1.0, %v1802
    %v1823 = vmul.f32 %v1423, %v1803
    %v1824 = vmul.f32 %v1424, %v1804
    %v1825 = vmul.f32 %v1425, %v1805
    %v1826 = vmul.f32 %v1426, %v1806
    %v1827 = vmul.f32 %v1427, %v1807
    %v1828 = vmul.f32 %v1428, %v1808
    %v1829 = vmul.f32 %v1429, %v1809
    %v1830 = vmul.f32 %v1430, %v1810
    %v1831 = vmul.f32 %v1431, %v1811
    %v1832 = vmul.f32 %v1432, %v1812
    %v1833 = vmul.f32 %v1433, %v1813
    %v1834 = vmul.f32 %v1434, %v1814
    %v1835 = vmul.f32 %v1435, %v1815
    %v1836 = vmul.f32 %v1436, %v1816
    %v1837 = vmul.f32 %v1437, %v1817
    %v1838 = vmul.f32 %v1438, %v1818
    %v1839 = vmul.f32 %v1439, %v1819
    %v1840 = vmul.f32 %v1440, %v1820
    %v1841 = vmul.f32 %v1441, %v1821
    %v1842 = vmul.f32 %v1442, %v1822
    %v1843 = vadd.f32 %v1823, 1.0
    %v1844 = vadd.f32 %v1824, 1.0
    %v1845 = vadd.f32 %v1825, 1.0
    %v1846 = vadd.f32 %v1826, 1.0
    %v1847 = vadd.f32 %v1827, 1.0
    %v1848 = vadd.f32 %v1828, 1.0
    %v1849 = vadd.f32 %v1829, 1.0
    %v1850 = vadd.f32 %v1830, 1.0
    %v1851 = vadd.f32 %v1831, 1.0
    %v1852 = vadd.f32 %v1832, 1.0
    %v1853 = vadd.f32 %v1833, 1.0
    %v1854 = vadd.f32 %v1834, 1.0
    %v1855 = vadd.f32 %v1835, 1.0
    %v1856 = vadd.f32 %v1836, 1.0
    %v1857 = vadd.f32 %v1837, 1.0
    %v1858 = vadd.f32 %v1838, 1.0
    %v1859 = vadd.f32 %v1839, 1.0
    %v1860 = vadd.f32 %v1840, 1.0
    %v1861 = vadd.f32 %v1841, 1.0
    %v1862 = vadd.f32 %v1842, 1.0
    %v1863 = vmul.f32 %v1363, %v1843
    %v1864 = vmul.f32 %v1364, %v1844
    %v1865 = vmul.f32 %v1365, %v1845
    %v1866 = vmul.f32 %v1366, %v1846
    %v1867 = vmul.f32 %v1367, %v1847
    %v1868 = vmul.f32 %v1368, %v1848
    %v1869 = vmul.f32 %v1369, %v1849
    %v1870 = vmul.f32 %v1370, %v1850
    %v1871 = vmul.f32 %v1371, %v1851
    %v1872 = vmul.f32 %v1372, %v1852
    %v1873 = vmul.f32 %v1373, %v1853
    %v1874 = vmul.f32 %v1374, %v1854
    %v1875 = vmul.f32 %v1375, %v1855
    %v1876 = vmul.f32 %v1376, %v1856
    %v1877 = vmul.f32 %v1377, %v1857
    %v1878 = vmul.f32 %v1378, %v1858
    %v1879 = vmul.f32 %v1379, %v1859
    %v1880 = vmul.f32 %v1380, %v1860
    %v1881 = vmul.f32 %v1381, %v1861
    %v1882 = vmul.f32 %v1382, %v1862
    %v1883 = vpack.c.bf16 %v1867, %v1863
    %v1884 = vpack.c.bf16 %v1868, %v1864
    %v1885 = vpack.c.bf16 %v1869, %v1865
    %v1886 = vpack.c.bf16 %v1870, %v1866
    %v1887 = vpack.c.bf16 %v1875, %v1871
    %v1888 = vpack.c.bf16 %v1876, %v1872
    %v1889 = vpack.c.bf16 %v1877, %v1873
    %v1890 = vpack.c.bf16 %v1878, %v1874
    %v1891 = vpack.c.bf16 %v1879, %v1879
    %v1892 = vpack.c.bf16 %v1880, %v1880
    %v1893 = vpack.c.bf16 %v1881, %v1881
    %v1894 = vpack.c.bf16 %v1882, %v1882
    %v1895 = vld [vmem:[%s7] sm:$0xf]
    %v1896 = vld [vmem:[%s7 + $0x4] sm:$0xf]
    %v1897 = vld [vmem:[%s7 + $0x8] sm:$0xf]
    %v1898 = vld [vmem:[%s7 + $0xc] sm:$0xf]
    %v1899 = vld [vmem:[%s7 + $0x10] sm:$0xf]
    %v1900 = vld [vmem:[%s7 + $0x14] sm:$0xf]
    %v1901 = vld [vmem:[%s7 + $0x18] sm:$0xf]
    %v1902 = vld [vmem:[%s7 + $0x1c] sm:$0xf]
    %v1903 = vld [vmem:[%s7 + $0x20] sm:$0xf]
    %v1904 = vld [vmem:[%s7 + $0x24] sm:$0xf]
    %v1905 = vld [vmem:[%s7 + $0x28] sm:$0xf]
    %v1906 = vld [vmem:[%s7 + $0x2c] sm:$0xf]
    %v1907 = vld [vmem:[%s7 + $0x30] sm:$0xf]
    %v1908 = vld [vmem:[%s7 + $0x34] sm:$0xf]
    %v1909 = vld [vmem:[%s7 + $0x38] sm:$0xf]
    %v1910 = vld [vmem:[%s7 + $0x3c] sm:$0xf]
    %v1911 = vld [vmem:[%s7 + $0x40] sm:$0xf]
    %v1912 = vld [vmem:[%s7 + $0x44] sm:$0xf]
    %v1913 = vld [vmem:[%s7 + $0x48] sm:$0xf]
    %v1914 = vld [vmem:[%s7 + $0x4c] sm:$0xf]
    %v1915 = vld [vmem:[%s7 + $0x50] sm:$0xf]
    %v1916 = vld [vmem:[%s7 + $0x54] sm:$0xf]
    %v1917 = vld [vmem:[%s7 + $0x58] sm:$0xf]
    %v1918 = vld [vmem:[%s7 + $0x5c] sm:$0xf]
    %v1919 = vld [vmem:[%s7 + $0x60] sm:$0xf]
    %v1920 = vld [vmem:[%s7 + $0x64] sm:$0xf]
    %v1921 = vld [vmem:[%s7 + $0x68] sm:$0xf]
    %v1922 = vld [vmem:[%s7 + $0x6c] sm:$0xf]
    %v1923 = vld [vmem:[%s7 + $0x70] sm:$0xf]
    %v1924 = vld [vmem:[%s7 + $0x74] sm:$0xf]
    %v1925 = vld [vmem:[%s7 + $0x78] sm:$0xf]
    %v1926 = vld [vmem:[%s7 + $0x7c] sm:$0xf]
    %v1927 = vld [vmem:[%s7 + $0x80] sm:$0xf]
    %v1928 = vld [vmem:[%s7 + $0x84] sm:$0xf]
    %v1929 = vld [vmem:[%s7 + $0x88] sm:$0xf]
    %v1930 = vld [vmem:[%s7 + $0x8c] sm:$0xf]
    %v1931 = vld [vmem:[%s7 + $0x90] sm:$0xf]
    %v1932 = vld [vmem:[%s7 + $0x94] sm:$0xf]
    %v1933 = vld [vmem:[%s7 + $0x98] sm:$0xf]
    %v1934 = vld [vmem:[%s7 + $0x9c] sm:$0xf]
    %v1935 = vld [vmem:[%s7 + $0xa0] sm:$0xf]
    %v1936 = vld [vmem:[%s7 + $0xa4] sm:$0xf]
    %v1937 = vld [vmem:[%s7 + $0xa8] sm:$0xf]
    %v1938 = vld [vmem:[%s7 + $0xac] sm:$0xf]
    %v1939 = vld [vmem:[%s7 + $0xb0] sm:$0xf]
    %v1940 = vld [vmem:[%s7 + $0xb4] sm:$0xf]
    %v1941 = vld [vmem:[%s7 + $0xb8] sm:$0xf]
    %v1942 = vld [vmem:[%s7 + $0xbc] sm:$0xf]
    %v1943 = vld [vmem:[%s7 + $0xc0] sm:$0xf]
    %v1944 = vld [vmem:[%s7 + $0xc4] sm:$0xf]
    %v1945 = vld [vmem:[%s7 + $0xc8] sm:$0xf]
    %v1946 = vld [vmem:[%s7 + $0xcc] sm:$0xf]
    %v1947 = vld [vmem:[%s7 + $0xd0] sm:$0xf]
    %v1948 = vld [vmem:[%s7 + $0xd4] sm:$0xf]
    %v1949 = vld [vmem:[%s7 + $0xd8] sm:$0xf]
    %v1950 = vld [vmem:[%s7 + $0xdc] sm:$0xf]
    %v1951 = vld [vmem:[%s7 + $0xe0] sm:$0xf]
    %v1952 = vld [vmem:[%s7 + $0xe4] sm:$0xf]
    %v1953 = vld [vmem:[%s7 + $0xe8] sm:$0xf]
    %v1954 = vld [vmem:[%s7 + $0xec] sm:$0xf]
    %v1955 = vld [vmem:[%s7 + $0xf0] sm:$0xf]
    %v1956 = vld [vmem:[%s7 + $0xf4] sm:$0xf]
    %v1957 = vld [vmem:[%s7 + $0xf8] sm:$0xf]
    %v1958 = vld [vmem:[%s7 + $0xfc] sm:$0xf]
    %v2023 = vunpack.c.l.b16 %v1895
    %v2024 = vunpack.c.l.b16 %v1896
    %v2025 = vunpack.c.l.b16 %v1897
    %v2026 = vunpack.c.l.b16 %v1898
    %v2027 = vunpack.c.l.b16 %v1899
    %v2028 = vunpack.c.l.b16 %v1900
    %v2029 = vunpack.c.l.b16 %v1901
    %v2030 = vunpack.c.l.b16 %v1902
    %v2031 = vunpack.c.l.b16 %v1903
    %v2032 = vunpack.c.l.b16 %v1904
    %v2033 = vunpack.c.l.b16 %v1905
    %v2034 = vunpack.c.l.b16 %v1906
    %v2035 = vunpack.c.l.b16 %v1907
    %v2036 = vunpack.c.l.b16 %v1908
    %v2037 = vunpack.c.l.b16 %v1909
    %v2038 = vunpack.c.l.b16 %v1910
    %v2039 = vunpack.c.l.b16 %v1911
    %v2040 = vunpack.c.l.b16 %v1912
    %v2041 = vunpack.c.l.b16 %v1913
    %v2042 = vunpack.c.l.b16 %v1914
    %v2043 = vunpack.c.l.b16 %v1915
    %v2044 = vunpack.c.l.b16 %v1916
    %v2045 = vunpack.c.l.b16 %v1917
    %v2046 = vunpack.c.l.b16 %v1918
    %v2047 = vunpack.c.l.b16 %v1919
    %v2048 = vunpack.c.l.b16 %v1920
    %v2049 = vunpack.c.l.b16 %v1921
    %v2050 = vunpack.c.l.b16 %v1922
    %v2051 = vunpack.c.l.b16 %v1923
    %v2052 = vunpack.c.l.b16 %v1924
    %v2053 = vunpack.c.l.b16 %v1925
    %v2054 = vunpack.c.l.b16 %v1926
    %v2055 = vunpack.c.l.b16 %v1927
    %v2056 = vunpack.c.l.b16 %v1928
    %v2057 = vunpack.c.l.b16 %v1929
    %v2058 = vunpack.c.l.b16 %v1930
    %v2059 = vunpack.c.l.b16 %v1931
    %v2060 = vunpack.c.l.b16 %v1932
    %v2061 = vunpack.c.l.b16 %v1933
    %v2062 = vunpack.c.l.b16 %v1934
    %v2063 = vunpack.c.l.b16 %v1935
    %v2064 = vunpack.c.l.b16 %v1936
    %v2065 = vunpack.c.l.b16 %v1937
    %v2066 = vunpack.c.l.b16 %v1938
    %v2067 = vunpack.c.l.b16 %v1939
    %v2068 = vunpack.c.l.b16 %v1940
    %v2069 = vunpack.c.l.b16 %v1941
    %v2070 = vunpack.c.l.b16 %v1942
    %v2071 = vunpack.c.l.b16 %v1943
    %v2072 = vunpack.c.l.b16 %v1944
    %v2073 = vunpack.c.l.b16 %v1945
    %v2074 = vunpack.c.l.b16 %v1946
    %v2075 = vunpack.c.l.b16 %v1947
    %v2076 = vunpack.c.l.b16 %v1948
    %v2077 = vunpack.c.l.b16 %v1949
    %v2078 = vunpack.c.l.b16 %v1950
    %v2079 = vunpack.c.l.b16 %v1951
    %v2080 = vunpack.c.l.b16 %v1952
    %v2081 = vunpack.c.l.b16 %v1953
    %v2082 = vunpack.c.l.b16 %v1954
    %v2083 = vunpack.c.l.b16 %v1955
    %v2084 = vunpack.c.l.b16 %v1956
    %v2085 = vunpack.c.l.b16 %v1957
    %v2086 = vunpack.c.l.b16 %v1958
    %v2087 = vpack.c.b16 %v2024, %v2023
    %v2088 = vpack.c.b16 %v2026, %v2025
    %v2089 = vpack.c.b16 %v2028, %v2027
    %v2090 = vpack.c.b16 %v2030, %v2029
    %v2091 = vpack.c.b16 %v2032, %v2031
    %v2092 = vpack.c.b16 %v2034, %v2033
    %v2093 = vpack.c.b16 %v2036, %v2035
    %v2094 = vpack.c.b16 %v2038, %v2037
    %v2095 = vpack.c.b16 %v2040, %v2039
    %v2096 = vpack.c.b16 %v2042, %v2041
    %v2097 = vpack.c.b16 %v2044, %v2043
    %v2098 = vpack.c.b16 %v2046, %v2045
    %v2099 = vpack.c.b16 %v2048, %v2047
    %v2100 = vpack.c.b16 %v2050, %v2049
    %v2101 = vpack.c.b16 %v2052, %v2051
    %v2102 = vpack.c.b16 %v2054, %v2053
    %v2103 = vpack.c.b16 %v2056, %v2055
    %v2104 = vpack.c.b16 %v2058, %v2057
    %v2105 = vpack.c.b16 %v2060, %v2059
    %v2106 = vpack.c.b16 %v2062, %v2061
    %v2107 = vpack.c.b16 %v2064, %v2063
    %v2108 = vpack.c.b16 %v2066, %v2065
    %v2109 = vpack.c.b16 %v2068, %v2067
    %v2110 = vpack.c.b16 %v2070, %v2069
    %v2111 = vpack.c.b16 %v2072, %v2071
    %v2112 = vpack.c.b16 %v2074, %v2073
    %v2113 = vpack.c.b16 %v2076, %v2075
    %v2114 = vpack.c.b16 %v2078, %v2077
    %v2115 = vpack.c.b16 %v2080, %v2079
    %v2116 = vpack.c.b16 %v2082, %v2081
    %v2117 = vpack.c.b16 %v2084, %v2083
    %v2118 = vpack.c.b16 %v2086, %v2085
    %2151 = vmatprep.subr.bf16.mxu0 0
    %2152 = vmatpush1.bf16.msra.mxu0 %v2094
    %2153 = vmatprep.subr.bf16.mxu0 0
    %2154 = vmatpush1.bf16.msra.mxu0 %v2093
    %2155 = vmatprep.subr.bf16.mxu0 0
    %2156 = vmatpush1.bf16.msra.mxu0 %v2092
    %2157 = vmatprep.subr.bf16.mxu0 0
    %2158 = vmatpush1.bf16.msra.mxu0 %v2091
    %2159 = vmatprep.subr.bf16.mxu0 0
    %2160 = vmatpush1.bf16.msra.mxu0 %v2090
    %2161 = vmatprep.subr.bf16.mxu0 0
    %2162 = vmatpush1.bf16.msra.mxu0 %v2089
    %2163 = vmatprep.subr.bf16.mxu0 0
    %2164 = vmatpush1.bf16.msra.mxu0 %v2088
    %2165 = vmatprep.subr.bf16.mxu0 0
    %2166 = vmatpush1.bf16.msra.mxu0 %v2087
    %2167 = vmatprep.subr.bf16.mxu0 0
    %2168 = vmatpush2.bf16.msra.mxu0 %v2102
    %2169 = vmatprep.subr.bf16.mxu0 0
    %2170 = vmatpush2.bf16.msra.mxu0 %v2101
    %2171 = vmatprep.subr.bf16.mxu0 0
    %2172 = vmatpush2.bf16.msra.mxu0 %v2100
    %2173 = vmatprep.subr.bf16.mxu0 0
    %2174 = vmatpush2.bf16.msra.mxu0 %v2099
    %2175 = vmatprep.subr.bf16.mxu0 0
    %2176 = vmatpush2.bf16.msra.mxu0 %v2098
    %2177 = vmatprep.subr.bf16.mxu0 0
    %2178 = vmatpush2.bf16.msra.mxu0 %v2097
    %2179 = vmatprep.subr.bf16.mxu0 0
    %2180 = vmatpush2.bf16.msra.mxu0 %v2096
    %2181 = vmatprep.subr.bf16.mxu0 0
    %2182 = vmatpush2.bf16.msra.mxu0 %v2095
    %2183 = vmatprep.mubr.bf16.mxu0 %v1884
    %2184 = vmatmul.mubr.bf16.gmra.mxu0 %v1883
    %v2185 = vpop.f32.mrf.mxu0
    %v2186 = vadd.f32 0.0, %v2185
    %v2187 = vpop.f32.mrf.mxu0
    %v2188 = vpop.f32.mrf.mxu0
    %v2189 = vadd.f32 0.0, %v2188
    %v2190 = vpop.f32.mrf.mxu0
    %2191 = vmatprep.mubr.bf16.mxu0 %v1888
    %2192 = vmatmul.mubr.bf16.gmra.mxu0 %v1887
    %v2193 = vpop.f32.mrf.mxu0
    %v2194 = vadd.f32 0.0, %v2193
    %v2195 = vpop.f32.mrf.mxu0
    %v2196 = vpop.f32.mrf.mxu0
    %v2197 = vadd.f32 0.0, %v2196
    %v2198 = vpop.f32.mrf.mxu0
    %2199 = vmatprep.mubr.bf16.mxu0 %v1892
    %2200 = vmatmul.mubr.bf16.gmra.mxu0 %v1891
    %v2201 = vpop.f32.mrf.mxu0
    %v2202 = vpop.f32.mrf.mxu0
    %v2203 = vpop.f32.mrf.mxu0
    %v2204 = vpop.f32.mrf.mxu0
    %2205 = vdwg.mxu0
    %2206 = vmatprep.subr.bf16.mxu0 0
    %2207 = vmatpush1.bf16.msra.mxu0 %v2110
    %2208 = vmatprep.subr.bf16.mxu0 0
    %2209 = vmatpush1.bf16.msra.mxu0 %v2109
    %2210 = vmatprep.subr.bf16.mxu0 0
    %2211 = vmatpush1.bf16.msra.mxu0 %v2108
    %2212 = vmatprep.subr.bf16.mxu0 0
    %2213 = vmatpush1.bf16.msra.mxu0 %v2107
    %2214 = vmatprep.subr.bf16.mxu0 0
    %2215 = vmatpush1.bf16.msra.mxu0 %v2106
    %2216 = vmatprep.subr.bf16.mxu0 0
    %2217 = vmatpush1.bf16.msra.mxu0 %v2105
    %2218 = vmatprep.subr.bf16.mxu0 0
    %2219 = vmatpush1.bf16.msra.mxu0 %v2104
    %2220 = vmatprep.subr.bf16.mxu0 0
    %2221 = vmatpush1.bf16.msra.mxu0 %v2103
    %2222 = vmatprep.subr.bf16.mxu0 0
    %2223 = vmatpush2.bf16.msra.mxu0 %v2118
    %2224 = vmatprep.subr.bf16.mxu0 0
    %2225 = vmatpush2.bf16.msra.mxu0 %v2117
    %2226 = vmatprep.subr.bf16.mxu0 0
    %2227 = vmatpush2.bf16.msra.mxu0 %v2116
    %2228 = vmatprep.subr.bf16.mxu0 0
    %2229 = vmatpush2.bf16.msra.mxu0 %v2115
    %2230 = vmatprep.subr.bf16.mxu0 0
    %2231 = vmatpush2.bf16.msra.mxu0 %v2114
    %2232 = vmatprep.subr.bf16.mxu0 0
    %2233 = vmatpush2.bf16.msra.mxu0 %v2113
    %2234 = vmatprep.subr.bf16.mxu0 0
    %2235 = vmatpush2.bf16.msra.mxu0 %v2112
    %2236 = vmatprep.subr.bf16.mxu0 0
    %2237 = vmatpush2.bf16.msra.mxu0 %v2111
    %2238 = vmatprep.mubr.bf16.mxu0 %v1886
    %2239 = vmatmul.mubr.bf16.gmra.mxu0 %v1885
    %v2240 = vpop.f32.mrf.mxu0
    %v2241 = vadd.f32 %v2186, %v2240
    %v2242 = vpop.f32.mrf.mxu0
    %v2243 = vpop.f32.mrf.mxu0
    %v2244 = vadd.f32 %v2189, %v2243
    %v2245 = vpop.f32.mrf.mxu0
    %2246 = vmatprep.mubr.bf16.mxu0 %v1890
    %2247 = vmatmul.mubr.bf16.gmra.mxu0 %v1889
    %v2248 = vpop.f32.mrf.mxu0
    %v2249 = vadd.f32 %v2194, %v2248
    %v2250 = vpop.f32.mrf.mxu0
    %v2251 = vpop.f32.mrf.mxu0
    %v2252 = vadd.f32 %v2197, %v2251
    %v2253 = vpop.f32.mrf.mxu0
    %2254 = vmatprep.mubr.bf16.mxu0 %v1894
    %2255 = vmatmul.mubr.bf16.gmra.mxu0 %v1893
    %v2256 = vpop.f32.mrf.mxu0
    %v2257 = vpop.f32.mrf.mxu0
    %v2258 = vpop.f32.mrf.mxu0
    %v2259 = vpop.f32.mrf.mxu0
    %2260 = vdwg.mxu0
    %v2261 = vadd.f32 %v944, %v2241
    %v2262 = vadd.f32 %v945, %v2244
    %v2263 = vadd.f32 %v946, %v2249
    %v2264 = vadd.f32 %v947, %v2252
    %v2265 = vlaneseq
    %v2266 = vshrl.u32 %v2265, 7
    %v2267 = vsub.s32 0, %v2266
    %v2268 = vrot.slane %v35, %v2267
    %v2269 = vadd.f32 %v2261, %v2268
    %v2270 = vadd.f32 %v2262, %v2268
    %v2271 = vadd.f32 %v2263, %v2268
    %v2272 = vadd.f32 %v2264, %v2268
    %2273 = vadd.xlane.f32.xlu0 %v2269
    %v2274 = vpop.xlane.xlu0 %2273
    %2275 = vadd.xlane.f32.xlu0 %v2270
    %v2276 = vpop.xlane.xlu0 %2275
    %2277 = vadd.xlane.f32.xlu0 %v2271
    %v2278 = vpop.xlane.xlu0 %2277
    %2279 = vadd.xlane.f32.xlu0 %v2272
    %v2280 = vpop.xlane.xlu0 %2279
    %v2281 = vmul.f32 %v2274, %v194
    %v2282 = vmul.f32 %v2276, %v194
    %v2283 = vmul.f32 %v2278, %v194
    %v2284 = vmul.f32 %v2280, %v194
    %v2285 = vsub.f32 %v2269, %v2281
    %v2286 = vsub.f32 %v2270, %v2282
    %v2287 = vsub.f32 %v2271, %v2283
    %v2288 = vsub.f32 %v2272, %v2284
    %v2289 = vmul.f32 %v2285, %v2285
    %v2290 = vmul.f32 %v2286, %v2286
    %v2291 = vmul.f32 %v2287, %v2287
    %v2292 = vmul.f32 %v2288, %v2288
    %2293 = vadd.xlane.f32.xlu0 %v2289
    %v2294 = vpop.xlane.xlu0 %2293
    %2295 = vadd.xlane.f32.xlu0 %v2290
    %v2296 = vpop.xlane.xlu0 %2295
    %2297 = vadd.xlane.f32.xlu0 %v2291
    %v2298 = vpop.xlane.xlu0 %2297
    %2299 = vadd.xlane.f32.xlu0 %v2292
    %v2300 = vpop.xlane.xlu0 %2299
    %v2301 = vmul.f32 %v2294, %v194
    %v2302 = vmul.f32 %v2296, %v194
    %v2303 = vmul.f32 %v2298, %v194
    %v2304 = vmul.f32 %v2300, %v194
    %v2305 = vadd.f32 %v2301, 1e-06
    %v2306 = vadd.f32 %v2302, 1e-06
    %v2307 = vadd.f32 %v2303, 1e-06
    %v2308 = vadd.f32 %v2304, 1e-06
    %v2309 = vrsqrt.pop %v2305
    %v2310 = vrsqrt.pop %v2306
    %v2311 = vrsqrt.pop %v2307
    %v2312 = vrsqrt.pop %v2308
    %v2313 = vmul.f32 %v2285, %v2309
    %v2314 = vmul.f32 %v2286, %v2310
    %v2315 = vmul.f32 %v2287, %v2311
    %v2316 = vmul.f32 %v2288, %v2312
    %v2317 = vlaneseq
    %v2318 = vshrl.u32 %v2317, 7
    %v2319 = vsub.s32 1, %v2318
    %v2320 = vrot.slane %v35, %v2319
    %v2321 = vmul.f32 %v2313, %v2320
    %v2322 = vmul.f32 %v2314, %v2320
    %v2323 = vmul.f32 %v2315, %v2320
    %v2324 = vmul.f32 %v2316, %v2320
    %v2325 = vlaneseq
    %v2326 = vshrl.u32 %v2325, 7
    %v2327 = vsub.s32 2, %v2326
    %v2328 = vrot.slane %v35, %v2327
    %v2329 = vadd.f32 %v2321, %v2328
    %v2330 = vadd.f32 %v2322, %v2328
    %v2331 = vadd.f32 %v2323, %v2328
    %v2332 = vadd.f32 %v2324, %v2328
    %2333 = vst [vmem:[#allocation2] sm:$0xff] %v2329
    %2334 = vst [vmem:[#allocation2 + $0x8] sm:$0xff] %v2330
    %2335 = vst [vmem:[#allocation2 + $0x10] sm:$0xff] %v2331
    %2336 = vst [vmem:[#allocation2 + $0x18] sm:$0xff] %v2332
    // Predicated region
    $region38: #{hist_encoder_forward.1} parent=1 // pred_check
      _
    $region39: #{hist_encoder_forward.1} parent=1 // pred_check_branch
      %2338 = sbr.rel (0) target = $region41
    $region40: #{hist_encoder_forward.1} parent=1 // pred_region
      %s2340 = ssub.s32 512, 512
      %2341 = vsyncadd [#allocation3], %s2340
      %s2342 = sshll.u32 [#allocation2], 4
      %s2343 = int_to_ptr.vmem [resolvable:$true] %s2342
      %2348 = dma.vmem_to_hbm [thread:$0]  %s2343, 512, %s9, [#allocation3], 128, 128, 8
    $region41: #{hist_encoder_forward.1} parent=1 // pred_fallthru
      _
    // Predicated region
    $region42: #{hist_encoder_forward.1} parent=1 // pred_check
      _
    $region43: #{hist_encoder_forward.1} parent=1 // pred_check_branch
      %2350 = sbr.rel (0) target = $region45
    $region44: #{hist_encoder_forward.1} parent=1 // pred_region
      %2351 = dma.done [#allocation3], 512
    $region45: #{hist_encoder_forward.1} parent=1 // pred_fallthru
      _
    %2352 = vsyncpa [#allocation3], 1

</llo_original>
